<compile_context>
chip_gen: v6e
topology: v6e:2x2x1
jax: 0.10.0
libtpu: 0.0.40
codegen_flags: <defaults>
</compile_context>

<pallas_src>
import functools

import numpy as np
import jax
import jax.numpy as jnp
from jax import lax
from jax.experimental import pallas as pl
from jax.experimental.pallas import tpu as pltpu


def _round_up(x, m):
    return ((x + m - 1) // m) * m


# ----------------------------- Pallas kernel ------------------------------- #
def diffusion_sampler_kernel(
    # SMEM coefficient tables, shape (T,), reversed-time order (i <-> timestep T-1-i)
    c1_ref, c2_ref,
    # VMEM inputs (fully resident; tiny at these shapes)
    xT_ref,        # (Bp, Dp)    f32   initial x_T (zero-padded)
    condh_ref,     # (Bp, H)     f32   cond @ W1c (loop-invariant, hoisted to XLA)
    tembh_ref,     # (T, Bp, H)  f32   temb @ W1t + b1, pre-broadcast over batch
    noise_ref,     # (T, Bp, Dp) f32   fused slab: sv[i]*noise[i] - c2[i]*b2
    w1x_ref,       # (Dp, H)     bf16  MXU operand
    w2_ref,        # (H, Dp)     bf16  MXU operand
    # output: x_0 (padded); HBM buffer aliased with the x_T input
    x_out_ref,
    *, w, T, unroll):
    cond_h = condh_ref[...]
    w1x = w1x_ref[...]
    w2 = w2_ref[...]

    # TODO(synk): per the perf review, at larger shapes stage W1x/W2 in the MXU
    # weight registers across the step loop (pltpu.matmul_push_rhs /
    # matmul_acc_lhs / matmul_pop) after confirming via bundle dump that Mosaic
    # is not already hoisting the weight latch under unrolling.
    def step(i, x):
        # eps-model layer 1: bf16 MXU operands, f32 accumulate, plus the
        # precomputed per-step time term (pre-broadcast -> no per-iter bcast op).
        h_base = (jnp.dot(x.astype(jnp.bfloat16), w1x,
                          preferred_element_type=jnp.float32)
                  + tembh_ref[i])
        # classifier-free guidance fused BEFORE layer 2 (exact algebra):
        #   (1+w)*eps_c - w*eps_u == ((1+w)*tanh(h+c) - w*tanh(h)) @ W2 + b2
        # The guidance combine stays in f32 (cancellation-sensitive), then casts.
        g = (1.0 + w) * jnp.tanh(h_base + cond_h) - w * jnp.tanh(h_base)
        eps_w2 = jnp.dot(g.astype(jnp.bfloat16), w2,
                         preferred_element_type=jnp.float32)
        # x_{t-1} = c1[t]*x_t - c2[t]*(g@W2) + (sv[t]*noise[t] - c2[t]*b2)
        return c1_ref[i] * x - c2_ref[i] * eps_w2 + noise_ref[i]

    x_out_ref[...] = lax.fori_loop(0, T, step, xT_ref[...], unroll=unroll)
    # TODO(synk): original torch loop prints the timestep to stdout and asserts
    # no NaNs every step; both are host-side side effects (NaN checked once outside).


# ------------------------------ wrapper ------------------------------------ #
@functools.partial(jax.jit, static_argnames=("w",))
def gaussian_diffusion_sample(x_T_flat, cond_flat, coeffs, temb_rev, noise_rev,
                              params, *, w):
    B, D_x = x_T_flat.shape
    c1_rev, c2_rev, sv_rev = coeffs
    T = c1_rev.shape[0]
    H = params["w2"].shape[0]

    # Lane / sublane padding: D -> multiple of 128, B -> multiple of 8.
    Dp = _round_up(D_x, 128)
    Bp = _round_up(B, 8)
    f32, bf16 = jnp.float32, jnp.bfloat16

    # ---- XLA-side hoisting of loop-invariant / tiny per-step matmuls ----
    cond_h = cond_flat @ params["w1c"]                                # (B, H)
    temb_h = (temb_rev @ params["w1t"] + params["b1"]).astype(f32)    # (T, H)
    tembh_b = jnp.broadcast_to(temb_h[:, None, :], (T, Bp, H))        # (T, Bp, H)

    xT_p = jnp.zeros((Bp, Dp), f32).at[:B, :D_x].set(x_T_flat.astype(f32))
    condh_p = jnp.zeros((Bp, H), f32).at[:B, :].set(cond_h.astype(f32))

    # Fused per-step additive slab: sv[i]*noise[i] - c2[i]*b2. Padded lanes of both
    # noise and b2 are zero, so padded output lanes stay zero (and padded batch
    # rows are sliced off anyway).
    noise_p = jnp.zeros((T, Bp, Dp), f32).at[:, :B, :D_x].set(noise_rev.astype(f32))
    b2_p = jnp.zeros((Dp,), f32).at[:D_x].set(params["b2"].reshape(-1).astype(f32))
    noise_fused = (sv_rev.astype(f32)[:, None, None] * noise_p
                   - c2_rev.astype(f32)[:, None, None] * b2_p[None, None, :])

    # bf16 MXU operands (single-pass MXU on v5e/v6e/v7x); padded weight rows/cols
    # stay zero so padding never leaks into real lanes. Everything else stays f32.
    w1x_p = jnp.zeros((Dp, H), bf16).at[:D_x, :].set(params["w1x"].astype(bf16))
    w2_p = jnp.zeros((H, Dp), bf16).at[:, :D_x].set(params["w2"].astype(bf16))

    smem = pl.BlockSpec(memory_space=pltpu.MemorySpace.SMEM)
    vmem = pl.BlockSpec(memory_space=pltpu.MemorySpace.VMEM)

    # Advisory cost estimate: 2 MXU matmuls + 2 tanh per step.
    flops = 4 * T * Bp * Dp * H
    transcendentals = 2 * T * Bp * H
    bytes_accessed = (4 * (2 * T + 2 * Bp * Dp + Bp * H + T * Bp * H + T * Bp * Dp)
                      + 2 * 2 * Dp * H)
    cost = pl.CostEstimate(flops=flops, transcendentals=transcendentals,
                           bytes_accessed=bytes_accessed)

    kernel = functools.partial(diffusion_sampler_kernel, w=float(w), T=T,
                               unroll=min(T, 8))

    # TODO(synk): at scaled shapes, stream the (T,Bp,Dp) noise slab from HBM
    # (memory_space=pl.ANY + double-buffered make_async_copy, or a T grid axis),
    # tile batch to >=128 rows to fill the 256x256 MXUs, and add a "parallel"
    # batch grid axis so v7x's second TensorCore is used.
    x0_p = pl.pallas_call(
        kernel,
        out_shape=jax.ShapeDtypeStruct((Bp, Dp), f32),
        in_specs=[smem, smem,                       # coeff1, coeff2 (reversed order)
                  vmem, vmem, vmem, vmem,           # x_T, cond_h, temb_h, fused noise
                  vmem, vmem],                      # W1x, W2 (bf16)
        out_specs=vmem,
        input_output_aliases={2: 0},                # reuse x_T's HBM buffer for x_0
        cost_estimate=cost,
    )(c1_rev.astype(f32), c2_rev.astype(f32),
      xT_p, condh_p, tembh_b, noise_fused, w1x_p, w2_p)

    return x0_p[:B, :D_x]


# --------------------------- pure-JAX reference ----------------------------- #
def reference_sample(x_T_flat, cond_flat, coeffs, temb_rev, noise_rev, params, *, w):
    c1_r, c2_r, sv_r = coeffs
    x = x_T_flat
    T = c1_r.shape[0]
    for i in range(T):
        temb = temb_rev[i]                                 # (D_t,)
        h_base = x @ params["w1x"] + temb @ params["w1t"] + params["b1"]
        h_cond = jnp.tanh(h_base + cond_flat @ params["w1c"])
        h_unc = jnp.tanh(h_base)
        eps_c = h_cond @ params["w2"] + params["b2"]
        eps_u = h_unc @ params["w2"] + params["b2"]
        eps = (1.0 + w) * eps_c - w * eps_u
        x = c1_r[i] * x - c2_r[i] * eps + sv_r[i] * noise_rev[i]
    return x


# --------------------------------- main ------------------------------------ #
if __name__ == "__main__":
    # Small shapes consistent with the module's comments:
    #   X_T:       (B, T_h, N, 3)
    #   condition: (B, T_f, N, 3)
    B, T_h, T_f, N = 2, 4, 4, 8
    D_x = T_h * N * 3          # 96
    D_c = T_f * N * 3          # 96
    H, D_t = 128, 32           # synthetic eps-model hidden / time-embedding dims
    T_steps = 8                # diffusion steps
    beta_1, beta_T, w_guid = 1e-4, 2e-2, 0.5

    # --- diffusion schedule (double precision via numpy, matching torch .double()) ---
    betas = np.linspace(beta_1, beta_T, T_steps, dtype=np.float64)
    alphas = 1.0 - betas
    alphas_bar = np.cumprod(alphas)
    alphas_bar_prev = np.concatenate([[1.0], alphas_bar])[:T_steps]
    coeff1 = np.sqrt(1.0 / alphas)
    coeff2 = coeff1 * (1.0 - alphas) / np.sqrt(1.0 - alphas_bar)
    posterior_var = betas * (1.0 - alphas_bar_prev) / (1.0 - alphas_bar)

    # reversed-time order: index i <-> timestep T-1-i
    rev = np.arange(T_steps - 1, -1, -1)
    c1_rev = jnp.asarray(coeff1[rev], jnp.float32)
    c2_rev = jnp.asarray(coeff2[rev], jnp.float32)
    sv_rev = jnp.asarray(np.sqrt(posterior_var)[rev], jnp.float32)
    coeffs = (c1_rev, c2_rev, sv_rev)

    # --- sinusoidal time embedding, reversed-time order (shared across batch) ---
    half = D_t // 2
    freqs = np.exp(-np.log(10000.0) * np.arange(half) / half)
    ts = np.arange(T_steps, dtype=np.float64)[:, None]
    emb = np.concatenate([np.sin(ts * freqs), np.cos(ts * freqs)], axis=-1)  # (T, D_t)
    temb_rev = jnp.asarray(emb[rev], jnp.float32)                            # (T, D_t)

    # --- deterministic inputs, noise, and synthetic eps-model weights ---
    key = jax.random.PRNGKey(0)
    k_x, k_c, k_n, k1, k2, k3, k4 = jax.random.split(key, 7)
    x_T = jax.random.normal(k_x, (B, T_h, N, 3), jnp.float32)
    condition = jax.random.normal(k_c, (B, T_f, N, 3), jnp.float32)
    x_T_flat = x_T.reshape(B, D_x)
    cond_flat = condition.reshape(B, D_c)

    # noise pre-sampled per timestep (torch samples inside the loop); the last
    # reversed step (timestep 0) uses zero noise, matching `noise = 0`.
    noise_rev = jax.random.normal(k_n, (T_steps, B, D_x), jnp.float32)
    noise_rev = noise_rev.at[T_steps - 1].set(0.0)

    params = {
        "w1x": jax.random.normal(k1, (D_x, H), jnp.float32) / np.sqrt(D_x),
        "w1c": jax.random.normal(k2, (D_c, H), jnp.float32) / np.sqrt(D_c),
        "w1t": jax.random.normal(k3, (D_t, H), jnp.float32) / np.sqrt(D_t),
        "b1": jnp.zeros((1, H), jnp.float32),
        "w2": jax.random.normal(k4, (H, D_x), jnp.float32) / np.sqrt(H),
        "b2": jnp.zeros((1, D_x), jnp.float32),
    }

    x0_flat = gaussian_diffusion_sample(
        x_T_flat, cond_flat, coeffs, temb_rev, noise_rev, params, w=w_guid)
    x0_flat = jax.block_until_ready(x0_flat)
    x0 = x0_flat.reshape(B, T_h, N, 3)

    # sanity checks vs. pure-JAX f32 reference; tolerance covers the bf16 MXU
    # operands (guidance/state math is still f32, so the gap stays small).
    ref = reference_sample(x_T_flat, cond_flat, coeffs, temb_rev, noise_rev,
                           params, w=w_guid)
    assert not bool(jnp.isnan(x0).any()), "nan in tensor."
    np.testing.assert_allclose(np.asarray(x0_flat), np.asarray(ref),
                               rtol=2e-2, atol=2e-2)

    print("KERNEL_OK")
</pallas_src>

<mosaic_0001>
module attributes {stable_mosaic.version = 11 : i64} {
  func.func @diffusion_sampler_kernel(%arg0: memref<8xf32, #tpu.memory_space<smem>>, %arg1: memref<8xf32, #tpu.memory_space<smem>>, %arg2: memref<8x128xf32, #tpu.memory_space<vmem>>, %arg3: memref<8x128xf32, #tpu.memory_space<vmem>>, %arg4: memref<8x8x128xf32, #tpu.memory_space<vmem>>, %arg5: memref<8x8x128xf32, #tpu.memory_space<vmem>>, %arg6: memref<128x128xbf16, #tpu.memory_space<vmem>>, %arg7: memref<128x128xbf16, #tpu.memory_space<vmem>>, %arg8: memref<8x128xf32, #tpu.memory_space<vmem>>) attributes {dimension_semantics = [], scalar_prefetch = 0 : i64, scratch_operands = 0 : i64, tpu.core_type = #tpu.core_type<tc>} {
    %c0 = arith.constant 0 : index
    %c0_0 = arith.constant 0 : index
    %0 = vector.load %arg3[%c0, %c0_0] : memref<8x128xf32, #tpu.memory_space<vmem>>, vector<8x128xf32>
    %c0_1 = arith.constant 0 : index
    %c0_2 = arith.constant 0 : index
    %1 = vector.load %arg6[%c0_1, %c0_2] : memref<128x128xbf16, #tpu.memory_space<vmem>>, vector<128x128xbf16>
    %c0_3 = arith.constant 0 : index
    %c0_4 = arith.constant 0 : index
    %2 = vector.load %arg7[%c0_3, %c0_4] : memref<128x128xbf16, #tpu.memory_space<vmem>>, vector<128x128xbf16>
    %c0_5 = arith.constant 0 : index
    %c0_6 = arith.constant 0 : index
    %3 = vector.load %arg2[%c0_5, %c0_6] : memref<8x128xf32, #tpu.memory_space<vmem>>, vector<8x128xf32>
    %c0_i32 = arith.constant 0 : i32
    %4 = arith.truncf %3 : vector<8x128xf32> to vector<8x128xbf16>
    %cst = arith.constant dense<0.000000e+00> : vector<8x128xf32>
    %5 = tpu.matmul %4, %1, %cst {dimension_numbers = #tpu.dot_dimension_numbers<[1], [0], [0], [1], [0, 0, 1, 1], [], []>} : vector<8x128xbf16>, vector<128x128xbf16>, vector<8x128xf32> -> vector<8x128xf32>
    %6 = arith.index_cast %c0_i32 : i32 to index
    %c0_7 = arith.constant 0 : index
    %c0_8 = arith.constant 0 : index
    %7 = vector.load %arg4[%6, %c0_7, %c0_8] : memref<8x8x128xf32, #tpu.memory_space<vmem>>, vector<1x8x128xf32>
    %8 = vector.shape_cast %7 : vector<1x8x128xf32> to vector<8x128xf32>
    %9 = arith.addf %5, %8 : vector<8x128xf32>
    %10 = arith.addf %9, %0 : vector<8x128xf32>
    %11 = math.tanh %10 : vector<8x128xf32>
    %cst_9 = arith.constant 1.500000e+00 : f32
    %12 = vector.broadcast %cst_9 : f32 to vector<8x128xf32>
    %13 = arith.mulf %12, %11 : vector<8x128xf32>
    %14 = math.tanh %9 : vector<8x128xf32>
    %cst_10 = arith.constant 5.000000e-01 : f32
    %15 = vector.broadcast %cst_10 : f32 to vector<8x128xf32>
    %16 = arith.mulf %15, %14 : vector<8x128xf32>
    %17 = arith.subf %13, %16 : vector<8x128xf32>
    %18 = arith.truncf %17 : vector<8x128xf32> to vector<8x128xbf16>
    %cst_11 = arith.constant dense<0.000000e+00> : vector<8x128xf32>
    %19 = tpu.matmul %18, %2, %cst_11 {dimension_numbers = #tpu.dot_dimension_numbers<[1], [0], [0], [1], [0, 0, 1, 1], [], []>} : vector<8x128xbf16>, vector<128x128xbf16>, vector<8x128xf32> -> vector<8x128xf32>
    %20 = arith.index_cast %c0_i32 : i32 to index
    %21 = memref.load %arg0[%20] : memref<8xf32, #tpu.memory_space<smem>>
    %22 = vector.broadcast %21 : f32 to vector<8x128xf32>
    %23 = arith.mulf %22, %3 : vector<8x128xf32>
    %24 = arith.index_cast %c0_i32 : i32 to index
    %25 = memref.load %arg1[%24] : memref<8xf32, #tpu.memory_space<smem>>
    %26 = vector.broadcast %25 : f32 to vector<8x128xf32>
    %27 = arith.mulf %26, %19 : vector<8x128xf32>
    %28 = arith.subf %23, %27 : vector<8x128xf32>
    %29 = arith.index_cast %c0_i32 : i32 to index
    %c0_12 = arith.constant 0 : index
    %c0_13 = arith.constant 0 : index
    %30 = vector.load %arg5[%29, %c0_12, %c0_13] : memref<8x8x128xf32, #tpu.memory_space<vmem>>, vector<1x8x128xf32>
    %31 = vector.shape_cast %30 : vector<1x8x128xf32> to vector<8x128xf32>
    %32 = arith.addf %28, %31 : vector<8x128xf32>
    %c1_i32 = arith.constant 1 : i32
    %33 = arith.truncf %32 : vector<8x128xf32> to vector<8x128xbf16>
    %cst_14 = arith.constant dense<0.000000e+00> : vector<8x128xf32>
    %34 = tpu.matmul %33, %1, %cst_14 {dimension_numbers = #tpu.dot_dimension_numbers<[1], [0], [0], [1], [0, 0, 1, 1], [], []>} : vector<8x128xbf16>, vector<128x128xbf16>, vector<8x128xf32> -> vector<8x128xf32>
    %35 = arith.index_cast %c1_i32 : i32 to index
    %c0_15 = arith.constant 0 : index
    %c0_16 = arith.constant 0 : index
    %36 = vector.load %arg4[%35, %c0_15, %c0_16] : memref<8x8x128xf32, #tpu.memory_space<vmem>>, vector<1x8x128xf32>
    %37 = vector.shape_cast %36 : vector<1x8x128xf32> to vector<8x128xf32>
    %38 = arith.addf %34, %37 : vector<8x128xf32>
    %39 = arith.addf %38, %0 : vector<8x128xf32>
    %40 = math.tanh %39 : vector<8x128xf32>
    %cst_17 = arith.constant 1.500000e+00 : f32
    %41 = vector.broadcast %cst_17 : f32 to vector<8x128xf32>
    %42 = arith.mulf %41, %40 : vector<8x128xf32>
    %43 = math.tanh %38 : vector<8x128xf32>
    %cst_18 = arith.constant 5.000000e-01 : f32
    %44 = vector.broadcast %cst_18 : f32 to vector<8x128xf32>
    %45 = arith.mulf %44, %43 : vector<8x128xf32>
    %46 = arith.subf %42, %45 : vector<8x128xf32>
    %47 = arith.truncf %46 : vector<8x128xf32> to vector<8x128xbf16>
    %cst_19 = arith.constant dense<0.000000e+00> : vector<8x128xf32>
    %48 = tpu.matmul %47, %2, %cst_19 {dimension_numbers = #tpu.dot_dimension_numbers<[1], [0], [0], [1], [0, 0, 1, 1], [], []>} : vector<8x128xbf16>, vector<128x128xbf16>, vector<8x128xf32> -> vector<8x128xf32>
    %49 = arith.index_cast %c1_i32 : i32 to index
    %50 = memref.load %arg0[%49] : memref<8xf32, #tpu.memory_space<smem>>
    %51 = vector.broadcast %50 : f32 to vector<8x128xf32>
    %52 = arith.mulf %51, %32 : vector<8x128xf32>
    %53 = arith.index_cast %c1_i32 : i32 to index
    %54 = memref.load %arg1[%53] : memref<8xf32, #tpu.memory_space<smem>>
    %55 = vector.broadcast %54 : f32 to vector<8x128xf32>
    %56 = arith.mulf %55, %48 : vector<8x128xf32>
    %57 = arith.subf %52, %56 : vector<8x128xf32>
    %58 = arith.index_cast %c1_i32 : i32 to index
    %c0_20 = arith.constant 0 : index
    %c0_21 = arith.constant 0 : index
    %59 = vector.load %arg5[%58, %c0_20, %c0_21] : memref<8x8x128xf32, #tpu.memory_space<vmem>>, vector<1x8x128xf32>
    %60 = vector.shape_cast %59 : vector<1x8x128xf32> to vector<8x128xf32>
    %61 = arith.addf %57, %60 : vector<8x128xf32>
    %c2_i32 = arith.constant 2 : i32
    %62 = arith.truncf %61 : vector<8x128xf32> to vector<8x128xbf16>
    %cst_22 = arith.constant dense<0.000000e+00> : vector<8x128xf32>
    %63 = tpu.matmul %62, %1, %cst_22 {dimension_numbers = #tpu.dot_dimension_numbers<[1], [0], [0], [1], [0, 0, 1, 1], [], []>} : vector<8x128xbf16>, vector<128x128xbf16>, vector<8x128xf32> -> vector<8x128xf32>
    %64 = arith.index_cast %c2_i32 : i32 to index
    %c0_23 = arith.constant 0 : index
    %c0_24 = arith.constant 0 : index
    %65 = vector.load %arg4[%64, %c0_23, %c0_24] : memref<8x8x128xf32, #tpu.memory_space<vmem>>, vector<1x8x128xf32>
    %66 = vector.shape_cast %65 : vector<1x8x128xf32> to vector<8x128xf32>
    %67 = arith.addf %63, %66 : vector<8x128xf32>
    %68 = arith.addf %67, %0 : vector<8x128xf32>
    %69 = math.tanh %68 : vector<8x128xf32>
    %cst_25 = arith.constant 1.500000e+00 : f32
    %70 = vector.broadcast %cst_25 : f32 to vector<8x128xf32>
    %71 = arith.mulf %70, %69 : vector<8x128xf32>
    %72 = math.tanh %67 : vector<8x128xf32>
    %cst_26 = arith.constant 5.000000e-01 : f32
    %73 = vector.broadcast %cst_26 : f32 to vector<8x128xf32>
    %74 = arith.mulf %73, %72 : vector<8x128xf32>
    %75 = arith.subf %71, %74 : vector<8x128xf32>
    %76 = arith.truncf %75 : vector<8x128xf32> to vector<8x128xbf16>
    %cst_27 = arith.constant dense<0.000000e+00> : vector<8x128xf32>
    %77 = tpu.matmul %76, %2, %cst_27 {dimension_numbers = #tpu.dot_dimension_numbers<[1], [0], [0], [1], [0, 0, 1, 1], [], []>} : vector<8x128xbf16>, vector<128x128xbf16>, vector<8x128xf32> -> vector<8x128xf32>
    %78 = arith.index_cast %c2_i32 : i32 to index
    %79 = memref.load %arg0[%78] : memref<8xf32, #tpu.memory_space<smem>>
    %80 = vector.broadcast %79 : f32 to vector<8x128xf32>
    %81 = arith.mulf %80, %61 : vector<8x128xf32>
    %82 = arith.index_cast %c2_i32 : i32 to index
    %83 = memref.load %arg1[%82] : memref<8xf32, #tpu.memory_space<smem>>
    %84 = vector.broadcast %83 : f32 to vector<8x128xf32>
    %85 = arith.mulf %84, %77 : vector<8x128xf32>
    %86 = arith.subf %81, %85 : vector<8x128xf32>
    %87 = arith.index_cast %c2_i32 : i32 to index
    %c0_28 = arith.constant 0 : index
    %c0_29 = arith.constant 0 : index
    %88 = vector.load %arg5[%87, %c0_28, %c0_29] : memref<8x8x128xf32, #tpu.memory_space<vmem>>, vector<1x8x128xf32>
    %89 = vector.shape_cast %88 : vector<1x8x128xf32> to vector<8x128xf32>
    %90 = arith.addf %86, %89 : vector<8x128xf32>
    %c3_i32 = arith.constant 3 : i32
    %91 = arith.truncf %90 : vector<8x128xf32> to vector<8x128xbf16>
    %cst_30 = arith.constant dense<0.000000e+00> : vector<8x128xf32>
    %92 = tpu.matmul %91, %1, %cst_30 {dimension_numbers = #tpu.dot_dimension_numbers<[1], [0], [0], [1], [0, 0, 1, 1], [], []>} : vector<8x128xbf16>, vector<128x128xbf16>, vector<8x128xf32> -> vector<8x128xf32>
    %93 = arith.index_cast %c3_i32 : i32 to index
    %c0_31 = arith.constant 0 : index
    %c0_32 = arith.constant 0 : index
    %94 = vector.load %arg4[%93, %c0_31, %c0_32] : memref<8x8x128xf32, #tpu.memory_space<vmem>>, vector<1x8x128xf32>
    %95 = vector.shape_cast %94 : vector<1x8x128xf32> to vector<8x128xf32>
    %96 = arith.addf %92, %95 : vector<8x128xf32>
    %97 = arith.addf %96, %0 : vector<8x128xf32>
    %98 = math.tanh %97 : vector<8x128xf32>
    %cst_33 = arith.constant 1.500000e+00 : f32
    %99 = vector.broadcast %cst_33 : f32 to vector<8x128xf32>
    %100 = arith.mulf %99, %98 : vector<8x128xf32>
    %101 = math.tanh %96 : vector<8x128xf32>
    %cst_34 = arith.constant 5.000000e-01 : f32
    %102 = vector.broadcast %cst_34 : f32 to vector<8x128xf32>
    %103 = arith.mulf %102, %101 : vector<8x128xf32>
    %104 = arith.subf %100, %103 : vector<8x128xf32>
    %105 = arith.truncf %104 : vector<8x128xf32> to vector<8x128xbf16>
    %cst_35 = arith.constant dense<0.000000e+00> : vector<8x128xf32>
    %106 = tpu.matmul %105, %2, %cst_35 {dimension_numbers = #tpu.dot_dimension_numbers<[1], [0], [0], [1], [0, 0, 1, 1], [], []>} : vector<8x128xbf16>, vector<128x128xbf16>, vector<8x128xf32> -> vector<8x128xf32>
    %107 = arith.index_cast %c3_i32 : i32 to index
    %108 = memref.load %arg0[%107] : memref<8xf32, #tpu.memory_space<smem>>
    %109 = vector.broadcast %108 : f32 to vector<8x128xf32>
    %110 = arith.mulf %109, %90 : vector<8x128xf32>
    %111 = arith.index_cast %c3_i32 : i32 to index
    %112 = memref.load %arg1[%111] : memref<8xf32, #tpu.memory_space<smem>>
    %113 = vector.broadcast %112 : f32 to vector<8x128xf32>
    %114 = arith.mulf %113, %106 : vector<8x128xf32>
    %115 = arith.subf %110, %114 : vector<8x128xf32>
    %116 = arith.index_cast %c3_i32 : i32 to index
    %c0_36 = arith.constant 0 : index
    %c0_37 = arith.constant 0 : index
    %117 = vector.load %arg5[%116, %c0_36, %c0_37] : memref<8x8x128xf32, #tpu.memory_space<vmem>>, vector<1x8x128xf32>
    %118 = vector.shape_cast %117 : vector<1x8x128xf32> to vector<8x128xf32>
    %119 = arith.addf %115, %118 : vector<8x128xf32>
    %c4_i32 = arith.constant 4 : i32
    %120 = arith.truncf %119 : vector<8x128xf32> to vector<8x128xbf16>
    %cst_38 = arith.constant dense<0.000000e+00> : vector<8x128xf32>
    %121 = tpu.matmul %120, %1, %cst_38 {dimension_numbers = #tpu.dot_dimension_numbers<[1], [0], [0], [1], [0, 0, 1, 1], [], []>} : vector<8x128xbf16>, vector<128x128xbf16>, vector<8x128xf32> -> vector<8x128xf32>
    %122 = arith.index_cast %c4_i32 : i32 to index
    %c0_39 = arith.constant 0 : index
    %c0_40 = arith.constant 0 : index
    %123 = vector.load %arg4[%122, %c0_39, %c0_40] : memref<8x8x128xf32, #tpu.memory_space<vmem>>, vector<1x8x128xf32>
    %124 = vector.shape_cast %123 : vector<1x8x128xf32> to vector<8x128xf32>
    %125 = arith.addf %121, %124 : vector<8x128xf32>
    %126 = arith.addf %125, %0 : vector<8x128xf32>
    %127 = math.tanh %126 : vector<8x128xf32>
    %cst_41 = arith.constant 1.500000e+00 : f32
    %128 = vector.broadcast %cst_41 : f32 to vector<8x128xf32>
    %129 = arith.mulf %128, %127 : vector<8x128xf32>
    %130 = math.tanh %125 : vector<8x128xf32>
    %cst_42 = arith.constant 5.000000e-01 : f32
    %131 = vector.broadcast %cst_42 : f32 to vector<8x128xf32>
    %132 = arith.mulf %131, %130 : vector<8x128xf32>
    %133 = arith.subf %129, %132 : vector<8x128xf32>
    %134 = arith.truncf %133 : vector<8x128xf32> to vector<8x128xbf16>
    %cst_43 = arith.constant dense<0.000000e+00> : vector<8x128xf32>
    %135 = tpu.matmul %134, %2, %cst_43 {dimension_numbers = #tpu.dot_dimension_numbers<[1], [0], [0], [1], [0, 0, 1, 1], [], []>} : vector<8x128xbf16>, vector<128x128xbf16>, vector<8x128xf32> -> vector<8x128xf32>
    %136 = arith.index_cast %c4_i32 : i32 to index
    %137 = memref.load %arg0[%136] : memref<8xf32, #tpu.memory_space<smem>>
    %138 = vector.broadcast %137 : f32 to vector<8x128xf32>
    %139 = arith.mulf %138, %119 : vector<8x128xf32>
    %140 = arith.index_cast %c4_i32 : i32 to index
    %141 = memref.load %arg1[%140] : memref<8xf32, #tpu.memory_space<smem>>
    %142 = vector.broadcast %141 : f32 to vector<8x128xf32>
    %143 = arith.mulf %142, %135 : vector<8x128xf32>
    %144 = arith.subf %139, %143 : vector<8x128xf32>
    %145 = arith.index_cast %c4_i32 : i32 to index
    %c0_44 = arith.constant 0 : index
    %c0_45 = arith.constant 0 : index
    %146 = vector.load %arg5[%145, %c0_44, %c0_45] : memref<8x8x128xf32, #tpu.memory_space<vmem>>, vector<1x8x128xf32>
    %147 = vector.shape_cast %146 : vector<1x8x128xf32> to vector<8x128xf32>
    %148 = arith.addf %144, %147 : vector<8x128xf32>
    %c5_i32 = arith.constant 5 : i32
    %149 = arith.truncf %148 : vector<8x128xf32> to vector<8x128xbf16>
    %cst_46 = arith.constant dense<0.000000e+00> : vector<8x128xf32>
    %150 = tpu.matmul %149, %1, %cst_46 {dimension_numbers = #tpu.dot_dimension_numbers<[1], [0], [0], [1], [0, 0, 1, 1], [], []>} : vector<8x128xbf16>, vector<128x128xbf16>, vector<8x128xf32> -> vector<8x128xf32>
    %151 = arith.index_cast %c5_i32 : i32 to index
    %c0_47 = arith.constant 0 : index
    %c0_48 = arith.constant 0 : index
    %152 = vector.load %arg4[%151, %c0_47, %c0_48] : memref<8x8x128xf32, #tpu.memory_space<vmem>>, vector<1x8x128xf32>
    %153 = vector.shape_cast %152 : vector<1x8x128xf32> to vector<8x128xf32>
    %154 = arith.addf %150, %153 : vector<8x128xf32>
    %155 = arith.addf %154, %0 : vector<8x128xf32>
    %156 = math.tanh %155 : vector<8x128xf32>
    %cst_49 = arith.constant 1.500000e+00 : f32
    %157 = vector.broadcast %cst_49 : f32 to vector<8x128xf32>
    %158 = arith.mulf %157, %156 : vector<8x128xf32>
    %159 = math.tanh %154 : vector<8x128xf32>
    %cst_50 = arith.constant 5.000000e-01 : f32
    %160 = vector.broadcast %cst_50 : f32 to vector<8x128xf32>
    %161 = arith.mulf %160, %159 : vector<8x128xf32>
    %162 = arith.subf %158, %161 : vector<8x128xf32>
    %163 = arith.truncf %162 : vector<8x128xf32> to vector<8x128xbf16>
    %cst_51 = arith.constant dense<0.000000e+00> : vector<8x128xf32>
    %164 = tpu.matmul %163, %2, %cst_51 {dimension_numbers = #tpu.dot_dimension_numbers<[1], [0], [0], [1], [0, 0, 1, 1], [], []>} : vector<8x128xbf16>, vector<128x128xbf16>, vector<8x128xf32> -> vector<8x128xf32>
    %165 = arith.index_cast %c5_i32 : i32 to index
    %166 = memref.load %arg0[%165] : memref<8xf32, #tpu.memory_space<smem>>
    %167 = vector.broadcast %166 : f32 to vector<8x128xf32>
    %168 = arith.mulf %167, %148 : vector<8x128xf32>
    %169 = arith.index_cast %c5_i32 : i32 to index
    %170 = memref.load %arg1[%169] : memref<8xf32, #tpu.memory_space<smem>>
    %171 = vector.broadcast %170 : f32 to vector<8x128xf32>
    %172 = arith.mulf %171, %164 : vector<8x128xf32>
    %173 = arith.subf %168, %172 : vector<8x128xf32>
    %174 = arith.index_cast %c5_i32 : i32 to index
    %c0_52 = arith.constant 0 : index
    %c0_53 = arith.constant 0 : index
    %175 = vector.load %arg5[%174, %c0_52, %c0_53] : memref<8x8x128xf32, #tpu.memory_space<vmem>>, vector<1x8x128xf32>
    %176 = vector.shape_cast %175 : vector<1x8x128xf32> to vector<8x128xf32>
    %177 = arith.addf %173, %176 : vector<8x128xf32>
    %c6_i32 = arith.constant 6 : i32
    %178 = arith.truncf %177 : vector<8x128xf32> to vector<8x128xbf16>
    %cst_54 = arith.constant dense<0.000000e+00> : vector<8x128xf32>
    %179 = tpu.matmul %178, %1, %cst_54 {dimension_numbers = #tpu.dot_dimension_numbers<[1], [0], [0], [1], [0, 0, 1, 1], [], []>} : vector<8x128xbf16>, vector<128x128xbf16>, vector<8x128xf32> -> vector<8x128xf32>
    %180 = arith.index_cast %c6_i32 : i32 to index
    %c0_55 = arith.constant 0 : index
    %c0_56 = arith.constant 0 : index
    %181 = vector.load %arg4[%180, %c0_55, %c0_56] : memref<8x8x128xf32, #tpu.memory_space<vmem>>, vector<1x8x128xf32>
    %182 = vector.shape_cast %181 : vector<1x8x128xf32> to vector<8x128xf32>
    %183 = arith.addf %179, %182 : vector<8x128xf32>
    %184 = arith.addf %183, %0 : vector<8x128xf32>
    %185 = math.tanh %184 : vector<8x128xf32>
    %cst_57 = arith.constant 1.500000e+00 : f32
    %186 = vector.broadcast %cst_57 : f32 to vector<8x128xf32>
    %187 = arith.mulf %186, %185 : vector<8x128xf32>
    %188 = math.tanh %183 : vector<8x128xf32>
    %cst_58 = arith.constant 5.000000e-01 : f32
    %189 = vector.broadcast %cst_58 : f32 to vector<8x128xf32>
    %190 = arith.mulf %189, %188 : vector<8x128xf32>
    %191 = arith.subf %187, %190 : vector<8x128xf32>
    %192 = arith.truncf %191 : vector<8x128xf32> to vector<8x128xbf16>
    %cst_59 = arith.constant dense<0.000000e+00> : vector<8x128xf32>
    %193 = tpu.matmul %192, %2, %cst_59 {dimension_numbers = #tpu.dot_dimension_numbers<[1], [0], [0], [1], [0, 0, 1, 1], [], []>} : vector<8x128xbf16>, vector<128x128xbf16>, vector<8x128xf32> -> vector<8x128xf32>
    %194 = arith.index_cast %c6_i32 : i32 to index
    %195 = memref.load %arg0[%194] : memref<8xf32, #tpu.memory_space<smem>>
    %196 = vector.broadcast %195 : f32 to vector<8x128xf32>
    %197 = arith.mulf %196, %177 : vector<8x128xf32>
    %198 = arith.index_cast %c6_i32 : i32 to index
    %199 = memref.load %arg1[%198] : memref<8xf32, #tpu.memory_space<smem>>
    %200 = vector.broadcast %199 : f32 to vector<8x128xf32>
    %201 = arith.mulf %200, %193 : vector<8x128xf32>
    %202 = arith.subf %197, %201 : vector<8x128xf32>
    %203 = arith.index_cast %c6_i32 : i32 to index
    %c0_60 = arith.constant 0 : index
    %c0_61 = arith.constant 0 : index
    %204 = vector.load %arg5[%203, %c0_60, %c0_61] : memref<8x8x128xf32, #tpu.memory_space<vmem>>, vector<1x8x128xf32>
    %205 = vector.shape_cast %204 : vector<1x8x128xf32> to vector<8x128xf32>
    %206 = arith.addf %202, %205 : vector<8x128xf32>
    %c7_i32 = arith.constant 7 : i32
    %207 = arith.truncf %206 : vector<8x128xf32> to vector<8x128xbf16>
    %cst_62 = arith.constant dense<0.000000e+00> : vector<8x128xf32>
    %208 = tpu.matmul %207, %1, %cst_62 {dimension_numbers = #tpu.dot_dimension_numbers<[1], [0], [0], [1], [0, 0, 1, 1], [], []>} : vector<8x128xbf16>, vector<128x128xbf16>, vector<8x128xf32> -> vector<8x128xf32>
    %209 = arith.index_cast %c7_i32 : i32 to index
    %c0_63 = arith.constant 0 : index
    %c0_64 = arith.constant 0 : index
    %210 = vector.load %arg4[%209, %c0_63, %c0_64] : memref<8x8x128xf32, #tpu.memory_space<vmem>>, vector<1x8x128xf32>
    %211 = vector.shape_cast %210 : vector<1x8x128xf32> to vector<8x128xf32>
    %212 = arith.addf %208, %211 : vector<8x128xf32>
    %213 = arith.addf %212, %0 : vector<8x128xf32>
    %214 = math.tanh %213 : vector<8x128xf32>
    %cst_65 = arith.constant 1.500000e+00 : f32
    %215 = vector.broadcast %cst_65 : f32 to vector<8x128xf32>
    %216 = arith.mulf %215, %214 : vector<8x128xf32>
    %217 = math.tanh %212 : vector<8x128xf32>
    %cst_66 = arith.constant 5.000000e-01 : f32
    %218 = vector.broadcast %cst_66 : f32 to vector<8x128xf32>
    %219 = arith.mulf %218, %217 : vector<8x128xf32>
    %220 = arith.subf %216, %219 : vector<8x128xf32>
    %221 = arith.truncf %220 : vector<8x128xf32> to vector<8x128xbf16>
    %cst_67 = arith.constant dense<0.000000e+00> : vector<8x128xf32>
    %222 = tpu.matmul %221, %2, %cst_67 {dimension_numbers = #tpu.dot_dimension_numbers<[1], [0], [0], [1], [0, 0, 1, 1], [], []>} : vector<8x128xbf16>, vector<128x128xbf16>, vector<8x128xf32> -> vector<8x128xf32>
    %223 = arith.index_cast %c7_i32 : i32 to index
    %224 = memref.load %arg0[%223] : memref<8xf32, #tpu.memory_space<smem>>
    %225 = vector.broadcast %224 : f32 to vector<8x128xf32>
    %226 = arith.mulf %225, %206 : vector<8x128xf32>
    %227 = arith.index_cast %c7_i32 : i32 to index
    %228 = memref.load %arg1[%227] : memref<8xf32, #tpu.memory_space<smem>>
    %229 = vector.broadcast %228 : f32 to vector<8x128xf32>
    %230 = arith.mulf %229, %222 : vector<8x128xf32>
    %231 = arith.subf %226, %230 : vector<8x128xf32>
    %232 = arith.index_cast %c7_i32 : i32 to index
    %c0_68 = arith.constant 0 : index
    %c0_69 = arith.constant 0 : index
    %233 = vector.load %arg5[%232, %c0_68, %c0_69] : memref<8x8x128xf32, #tpu.memory_space<vmem>>, vector<1x8x128xf32>
    %234 = vector.shape_cast %233 : vector<1x8x128xf32> to vector<8x128xf32>
    %235 = arith.addf %231, %234 : vector<8x128xf32>
    %c8_i32 = arith.constant 8 : i32
    %c0_70 = arith.constant 0 : index
    %c0_71 = arith.constant 0 : index
    %236 = vector.load %arg8[%c0_70, %c0_71] : memref<8x128xf32, #tpu.memory_space<vmem>>, vector<8x128xf32>
    tpu.vector_store %arg8[%c0_70, %c0_71], %235 {strides = array<i32>} : memref<8x128xf32, #tpu.memory_space<vmem>>, vector<8x128xf32>,
    return
  }
}

</mosaic_0001>

<llo_original>
// kernel: gaussian_diffusion_sample.1
$region0: #{gaussian_diffusion_sample.1}
  #allocation0 [shape = 'u32[]', space=smem, size = 0x4, offset = 0x4, fixed_abs, tag = 'smem constant byte address 0x4 - core index']
  #allocation1 [shape = 'u32[144,128]{1,0:T(1,128)}', space=vmem, size = 0x12000, scoped, tag = 'internal scratch']
  %s0 = inlined_call_operand.vmem [shape: f32[8], index: 0, kind: input, shape index: {}]
  %s1 = inlined_call_operand.vmem [shape: f32[8], index: 1, kind: input, shape index: {}]
  %s2 = inlined_call_operand.vmem [shape: f32[8,128], index: 2, kind: input, shape index: {}, may-alias: {2,8}]
  %s3 = inlined_call_operand.vmem [shape: f32[8,128], index: 3, kind: input, shape index: {}]
  %s4 = inlined_call_operand.vmem [shape: f32[8,8,128], index: 4, kind: input, shape index: {}]
  %s5 = inlined_call_operand.vmem [shape: f32[8,8,128], index: 5, kind: input, shape index: {}]
  %s6 = inlined_call_operand.vmem [shape: bf16[128,128], index: 6, kind: input, shape index: {}]
  %s7 = inlined_call_operand.vmem [shape: bf16[128,128], index: 7, kind: input, shape index: {}]
  %s8 = inlined_call_operand.vmem [shape: f32[8,128], index: 8, kind: output, shape index: {}, may-alias: {2,8}]
  %s9 = sld [smem:[#allocation0]]
  $region50: #{gaussian_diffusion_sample.1} parent=0
    _
  %s11 = ssub.s32 1, %s9
  %s12 = scalar_select 0, %s11, %s9
  $region1: #{gaussian_diffusion_sample.1} parent=0
    #allocation2 [shape = 'u8[512]{0}', space=smem, size = 0x200, scoped, tag = 'input window, operand 0, single buffered']
    #allocation3 [shape = 's32[1]{0}', space=sflag, size = 0x4, scoped, tag = 'scoped memory for gaussian_diffusion_sample.1']
    #allocation4 [shape = 'u8[512]{0}', space=smem, size = 0x200, scoped, tag = 'input window, operand 1, single buffered']
    #allocation5 [shape = 's32[1]{0}', space=sflag, size = 0x4, scoped, tag = 'scoped memory for gaussian_diffusion_sample.1']
    %13 = vsyncpa [#allocation3], 0
    %14 = vsyncpa [#allocation5], 0
    // Predicated region
    $region2: #{gaussian_diffusion_sample.1} parent=1 // pred_check
      _
    $region3: #{gaussian_diffusion_sample.1} parent=1 // pred_check_branch
      %16 = sbr.rel (0) target = $region5
    $region4: #{gaussian_diffusion_sample.1} parent=1 // pred_region
      %s18 = ssub.s32 16, 16
      %19 = vsyncadd [#allocation3], %s18
      %s21 = sshll.u32 %s0, 4
      %s22 = int_to_ptr.vmem [resolvable:$true] %s21
      %24 = dma.vmem_to_smem %s22, 16, [#allocation2], [#allocation3]
    $region5: #{gaussian_diffusion_sample.1} parent=1 // pred_fallthru
      _
    // Predicated region
    $region6: #{gaussian_diffusion_sample.1} parent=1 // pred_check
      _
    $region7: #{gaussian_diffusion_sample.1} parent=1 // pred_check_branch
      %26 = sbr.rel (0) target = $region9
    $region8: #{gaussian_diffusion_sample.1} parent=1 // pred_region
      %s28 = ssub.s32 16, 16
      %29 = vsyncadd [#allocation5], %s28
      %s31 = sshll.u32 %s1, 4
      %s32 = int_to_ptr.vmem [resolvable:$true] %s31
      %34 = dma.vmem_to_smem %s32, 16, [#allocation4], [#allocation5]
    $region9: #{gaussian_diffusion_sample.1} parent=1 // pred_fallthru
      _
    // Predicated region
    $region10: #{gaussian_diffusion_sample.1} parent=1 // pred_check
      _
    $region11: #{gaussian_diffusion_sample.1} parent=1 // pred_check_branch
      %36 = sbr.rel (0) target = $region13
    $region12: #{gaussian_diffusion_sample.1} parent=1 // pred_region
      _
    $region13: #{gaussian_diffusion_sample.1} parent=1 // pred_fallthru
      _
    // Predicated region
    $region14: #{gaussian_diffusion_sample.1} parent=1 // pred_check
      _
    $region15: #{gaussian_diffusion_sample.1} parent=1 // pred_check_branch
      %38 = sbr.rel (0) target = $region17
    $region16: #{gaussian_diffusion_sample.1} parent=1 // pred_region
      _
    $region17: #{gaussian_diffusion_sample.1} parent=1 // pred_fallthru
      _
    // Predicated region
    $region18: #{gaussian_diffusion_sample.1} parent=1 // pred_check
      _
    $region19: #{gaussian_diffusion_sample.1} parent=1 // pred_check_branch
      %40 = sbr.rel (0) target = $region21
    $region20: #{gaussian_diffusion_sample.1} parent=1 // pred_region
      _
    $region21: #{gaussian_diffusion_sample.1} parent=1 // pred_fallthru
      _
    // Predicated region
    $region22: #{gaussian_diffusion_sample.1} parent=1 // pred_check
      _
    $region23: #{gaussian_diffusion_sample.1} parent=1 // pred_check_branch
      %42 = sbr.rel (0) target = $region25
    $region24: #{gaussian_diffusion_sample.1} parent=1 // pred_region
      _
    $region25: #{gaussian_diffusion_sample.1} parent=1 // pred_fallthru
      _
    // Predicated region
    $region26: #{gaussian_diffusion_sample.1} parent=1 // pred_check
      _
    $region27: #{gaussian_diffusion_sample.1} parent=1 // pred_check_branch
      %44 = sbr.rel (0) target = $region29
    $region28: #{gaussian_diffusion_sample.1} parent=1 // pred_region
      _
    $region29: #{gaussian_diffusion_sample.1} parent=1 // pred_fallthru
      _
    // Predicated region
    $region30: #{gaussian_diffusion_sample.1} parent=1 // pred_check
      _
    $region31: #{gaussian_diffusion_sample.1} parent=1 // pred_check_branch
      %46 = sbr.rel (0) target = $region33
    $region32: #{gaussian_diffusion_sample.1} parent=1 // pred_region
      _
    $region33: #{gaussian_diffusion_sample.1} parent=1 // pred_fallthru
      _
    // Predicated region
    $region34: #{gaussian_diffusion_sample.1} parent=1 // pred_check
      _
    $region35: #{gaussian_diffusion_sample.1} parent=1 // pred_check_branch
      %48 = sbr.rel (0) target = $region37
    $region36: #{gaussian_diffusion_sample.1} parent=1 // pred_region
      %49 = dma.done [#allocation3], 16
    $region37: #{gaussian_diffusion_sample.1} parent=1 // pred_fallthru
      _
    // Predicated region
    $region38: #{gaussian_diffusion_sample.1} parent=1 // pred_check
      _
    $region39: #{gaussian_diffusion_sample.1} parent=1 // pred_check_branch
      %51 = sbr.rel (0) target = $region41
    $region40: #{gaussian_diffusion_sample.1} parent=1 // pred_region
      %52 = dma.done [#allocation5], 16
    $region41: #{gaussian_diffusion_sample.1} parent=1 // pred_fallthru
      _
    %53 = sfence
    %v55 = vld [vmem:[%s3] sm:$0xff]
    %v56 = vld [vmem:[%s6] sm:$0xf]
    %v57 = vld [vmem:[%s6 + $0x4] sm:$0xf]
    %v58 = vld [vmem:[%s6 + $0x8] sm:$0xf]
    %v59 = vld [vmem:[%s6 + $0xc] sm:$0xf]
    %v60 = vld [vmem:[%s6 + $0x10] sm:$0xf]
    %v61 = vld [vmem:[%s6 + $0x14] sm:$0xf]
    %v62 = vld [vmem:[%s6 + $0x18] sm:$0xf]
    %v63 = vld [vmem:[%s6 + $0x1c] sm:$0xf]
    %v64 = vld [vmem:[%s6 + $0x20] sm:$0xf]
    %v65 = vld [vmem:[%s6 + $0x24] sm:$0xf]
    %v66 = vld [vmem:[%s6 + $0x28] sm:$0xf]
    %v67 = vld [vmem:[%s6 + $0x2c] sm:$0xf]
    %v68 = vld [vmem:[%s6 + $0x30] sm:$0xf]
    %v69 = vld [vmem:[%s6 + $0x34] sm:$0xf]
    %v70 = vld [vmem:[%s6 + $0x38] sm:$0xf]
    %v71 = vld [vmem:[%s6 + $0x3c] sm:$0xf]
    %v72 = vld [vmem:[%s7] sm:$0xf]
    %v73 = vld [vmem:[%s7 + $0x4] sm:$0xf]
    %v74 = vld [vmem:[%s7 + $0x8] sm:$0xf]
    %v75 = vld [vmem:[%s7 + $0xc] sm:$0xf]
    %v76 = vld [vmem:[%s7 + $0x10] sm:$0xf]
    %v77 = vld [vmem:[%s7 + $0x14] sm:$0xf]
    %v78 = vld [vmem:[%s7 + $0x18] sm:$0xf]
    %v79 = vld [vmem:[%s7 + $0x1c] sm:$0xf]
    %v80 = vld [vmem:[%s7 + $0x20] sm:$0xf]
    %v81 = vld [vmem:[%s7 + $0x24] sm:$0xf]
    %v82 = vld [vmem:[%s7 + $0x28] sm:$0xf]
    %v83 = vld [vmem:[%s7 + $0x2c] sm:$0xf]
    %v84 = vld [vmem:[%s7 + $0x30] sm:$0xf]
    %v85 = vld [vmem:[%s7 + $0x34] sm:$0xf]
    %v86 = vld [vmem:[%s7 + $0x38] sm:$0xf]
    %v87 = vld [vmem:[%s7 + $0x3c] sm:$0xf]
    %v88 = vld [vmem:[%s2] sm:$0xff]
    %v89 = vpack.c.bf16 %v88, %v88
    %v90 = vld [vmem:[%s4] sm:$0xff]
    %v107 = vunpack.c.l.b16 %v56
    %v108 = vunpack.c.l.b16 %v57
    %v109 = vunpack.c.l.b16 %v58
    %v110 = vunpack.c.l.b16 %v59
    %v111 = vunpack.c.l.b16 %v60
    %v112 = vunpack.c.l.b16 %v61
    %v113 = vunpack.c.l.b16 %v62
    %v114 = vunpack.c.l.b16 %v63
    %v115 = vunpack.c.l.b16 %v64
    %v116 = vunpack.c.l.b16 %v65
    %v117 = vunpack.c.l.b16 %v66
    %v118 = vunpack.c.l.b16 %v67
    %v119 = vunpack.c.l.b16 %v68
    %v120 = vunpack.c.l.b16 %v69
    %v121 = vunpack.c.l.b16 %v70
    %v122 = vunpack.c.l.b16 %v71
    %v123 = vpack.c.b16 %v108, %v107
    %v124 = vpack.c.b16 %v110, %v109
    %v125 = vpack.c.b16 %v112, %v111
    %v126 = vpack.c.b16 %v114, %v113
    %v127 = vpack.c.b16 %v116, %v115
    %v128 = vpack.c.b16 %v118, %v117
    %v129 = vpack.c.b16 %v120, %v119
    %v130 = vpack.c.b16 %v122, %v121
    %139 = vmatprep.subr.bf16.mxu0 0
    %140 = vmatpush1.bf16.msra.mxu0 %v130
    %141 = vmatprep.subr.bf16.mxu0 0
    %142 = vmatpush1.bf16.msra.mxu0 %v129
    %143 = vmatprep.subr.bf16.mxu0 0
    %144 = vmatpush1.bf16.msra.mxu0 %v128
    %145 = vmatprep.subr.bf16.mxu0 0
    %146 = vmatpush1.bf16.msra.mxu0 %v127
    %147 = vmatprep.subr.bf16.mxu0 0
    %148 = vmatpush1.bf16.msra.mxu0 %v126
    %149 = vmatprep.subr.bf16.mxu0 0
    %150 = vmatpush1.bf16.msra.mxu0 %v125
    %151 = vmatprep.subr.bf16.mxu0 0
    %152 = vmatpush1.bf16.msra.mxu0 %v124
    %153 = vmatprep.subr.bf16.mxu0 0
    %154 = vmatpush1.bf16.msra.mxu0 %v123
    %155 = vmatprep.subr.bf16.mxu0 0
    %156 = vmatpush2.bf16.msra.mxu0 0
    %157 = vmatprep.subr.bf16.mxu0 0
    %158 = vmatpush2.bf16.msra.mxu0 0
    %159 = vmatprep.subr.bf16.mxu0 0
    %160 = vmatpush2.bf16.msra.mxu0 0
    %161 = vmatprep.subr.bf16.mxu0 0
    %162 = vmatpush2.bf16.msra.mxu0 0
    %163 = vmatprep.subr.bf16.mxu0 0
    %164 = vmatpush2.bf16.msra.mxu0 0
    %165 = vmatprep.subr.bf16.mxu0 0
    %166 = vmatpush2.bf16.msra.mxu0 0
    %167 = vmatprep.subr.bf16.mxu0 0
    %168 = vmatpush2.bf16.msra.mxu0 0
    %169 = vmatprep.subr.bf16.mxu0 0
    %170 = vmatpush2.bf16.msra.mxu0 0
    %171 = vmatprep.mubr.bf16.mxu0 0
    %172 = vmatmul.mubr.bf16.gmra.mxu0 %v89
    %v173 = vpop.f32.mrf.mxu0
    %v174 = vadd.f32 %v90, %v173
    %v175 = vpop.f32.mrf.mxu0
    %v176 = vpop.f32.mrf.mxu0
    %v177 = vpop.f32.mrf.mxu0
    %178 = vdwg.mxu0
    %v179 = vadd.f32 %v174, %v55
    %v180 = vtanh.pop %v179
    %v181 = vmul.f32 %v180, 1.5
    %v182 = vtanh.pop %v174
    %v183 = vmul.f32 %v182, 0.5
    %v184 = vsub.f32 %v181, %v183
    %v185 = vpack.c.bf16 %v184, %v184
    %v202 = vunpack.c.l.b16 %v72
    %v203 = vunpack.c.l.b16 %v73
    %v204 = vunpack.c.l.b16 %v74
    %v205 = vunpack.c.l.b16 %v75
    %v206 = vunpack.c.l.b16 %v76
    %v207 = vunpack.c.l.b16 %v77
    %v208 = vunpack.c.l.b16 %v78
    %v209 = vunpack.c.l.b16 %v79
    %v210 = vunpack.c.l.b16 %v80
    %v211 = vunpack.c.l.b16 %v81
    %v212 = vunpack.c.l.b16 %v82
    %v213 = vunpack.c.l.b16 %v83
    %v214 = vunpack.c.l.b16 %v84
    %v215 = vunpack.c.l.b16 %v85
    %v216 = vunpack.c.l.b16 %v86
    %v217 = vunpack.c.l.b16 %v87
    %v218 = vpack.c.b16 %v203, %v202
    %v219 = vpack.c.b16 %v205, %v204
    %v220 = vpack.c.b16 %v207, %v206
    %v221 = vpack.c.b16 %v209, %v208
    %v222 = vpack.c.b16 %v211, %v210
    %v223 = vpack.c.b16 %v213, %v212
    %v224 = vpack.c.b16 %v215, %v214
    %v225 = vpack.c.b16 %v217, %v216
    %234 = vmatprep.subr.bf16.mxu0 0
    %235 = vmatpush1.bf16.msra.mxu0 %v225
    %236 = vmatprep.subr.bf16.mxu0 0
    %237 = vmatpush1.bf16.msra.mxu0 %v224
    %238 = vmatprep.subr.bf16.mxu0 0
    %239 = vmatpush1.bf16.msra.mxu0 %v223
    %240 = vmatprep.subr.bf16.mxu0 0
    %241 = vmatpush1.bf16.msra.mxu0 %v222
    %242 = vmatprep.subr.bf16.mxu0 0
    %243 = vmatpush1.bf16.msra.mxu0 %v221
    %244 = vmatprep.subr.bf16.mxu0 0
    %245 = vmatpush1.bf16.msra.mxu0 %v220
    %246 = vmatprep.subr.bf16.mxu0 0
    %247 = vmatpush1.bf16.msra.mxu0 %v219
    %248 = vmatprep.subr.bf16.mxu0 0
    %249 = vmatpush1.bf16.msra.mxu0 %v218
    %250 = vmatprep.subr.bf16.mxu0 0
    %251 = vmatpush2.bf16.msra.mxu0 0
    %252 = vmatprep.subr.bf16.mxu0 0
    %253 = vmatpush2.bf16.msra.mxu0 0
    %254 = vmatprep.subr.bf16.mxu0 0
    %255 = vmatpush2.bf16.msra.mxu0 0
    %256 = vmatprep.subr.bf16.mxu0 0
    %257 = vmatpush2.bf16.msra.mxu0 0
    %258 = vmatprep.subr.bf16.mxu0 0
    %259 = vmatpush2.bf16.msra.mxu0 0
    %260 = vmatprep.subr.bf16.mxu0 0
    %261 = vmatpush2.bf16.msra.mxu0 0
    %262 = vmatprep.subr.bf16.mxu0 0
    %263 = vmatpush2.bf16.msra.mxu0 0
    %264 = vmatprep.subr.bf16.mxu0 0
    %265 = vmatpush2.bf16.msra.mxu0 0
    %266 = vmatprep.mubr.bf16.mxu0 0
    %267 = vmatmul.mubr.bf16.gmra.mxu0 %v185
    %v268 = vpop.f32.mrf.mxu0
    %v269 = vadd.f32 0.0, %v268
    %v270 = vpop.f32.mrf.mxu0
    %v271 = vpop.f32.mrf.mxu0
    %v272 = vpop.f32.mrf.mxu0
    %273 = vdwg.mxu0
    %s274 = sld [smem:[#allocation2]]
    %v275 = vstv %s274
    %v276 = vmul.f32 %v275, %v88
    %s277 = sld [smem:[#allocation4]]
    %v278 = vstv %s277
    %v279 = vmul.f32 %v278, %v269
    %v280 = vsub.f32 %v276, %v279
    %v281 = vld [vmem:[%s5] sm:$0xff]
    %v282 = vadd.f32 %v280, %v281
    %v283 = vpack.c.bf16 %v282, %v282
    %s284 = scalar_lea.vmem %s4, 8
    %v285 = vld [vmem:[%s284] sm:$0xff]
    %286 = vmatprep.subr.bf16.mxu0 0
    %287 = vmatpush1.bf16.msra.mxu0 %v130
    %288 = vmatprep.subr.bf16.mxu0 0
    %289 = vmatpush1.bf16.msra.mxu0 %v129
    %290 = vmatprep.subr.bf16.mxu0 0
    %291 = vmatpush1.bf16.msra.mxu0 %v128
    %292 = vmatprep.subr.bf16.mxu0 0
    %293 = vmatpush1.bf16.msra.mxu0 %v127
    %294 = vmatprep.subr.bf16.mxu0 0
    %295 = vmatpush1.bf16.msra.mxu0 %v126
    %296 = vmatprep.subr.bf16.mxu0 0
    %297 = vmatpush1.bf16.msra.mxu0 %v125
    %298 = vmatprep.subr.bf16.mxu0 0
    %299 = vmatpush1.bf16.msra.mxu0 %v124
    %300 = vmatprep.subr.bf16.mxu0 0
    %301 = vmatpush1.bf16.msra.mxu0 %v123
    %302 = vmatprep.subr.bf16.mxu0 0
    %303 = vmatpush2.bf16.msra.mxu0 0
    %304 = vmatprep.subr.bf16.mxu0 0
    %305 = vmatpush2.bf16.msra.mxu0 0
    %306 = vmatprep.subr.bf16.mxu0 0
    %307 = vmatpush2.bf16.msra.mxu0 0
    %308 = vmatprep.subr.bf16.mxu0 0
    %309 = vmatpush2.bf16.msra.mxu0 0
    %310 = vmatprep.subr.bf16.mxu0 0
    %311 = vmatpush2.bf16.msra.mxu0 0
    %312 = vmatprep.subr.bf16.mxu0 0
    %313 = vmatpush2.bf16.msra.mxu0 0
    %314 = vmatprep.subr.bf16.mxu0 0
    %315 = vmatpush2.bf16.msra.mxu0 0
    %316 = vmatprep.subr.bf16.mxu0 0
    %317 = vmatpush2.bf16.msra.mxu0 0
    %318 = vmatprep.mubr.bf16.mxu0 0
    %319 = vmatmul.mubr.bf16.gmra.mxu0 %v283
    %v320 = vpop.f32.mrf.mxu0
    %v321 = vadd.f32 %v285, %v320
    %v322 = vpop.f32.mrf.mxu0
    %v323 = vpop.f32.mrf.mxu0
    %v324 = vpop.f32.mrf.mxu0
    %325 = vdwg.mxu0
    %v326 = vadd.f32 %v321, %v55
    %v327 = vtanh.pop %v326
    %v328 = vmul.f32 %v327, 1.5
    %v329 = vtanh.pop %v321
    %v330 = vmul.f32 %v329, 0.5
    %v331 = vsub.f32 %v328, %v330
    %v332 = vpack.c.bf16 %v331, %v331
    %333 = vmatprep.subr.bf16.mxu0 0
    %334 = vmatpush1.bf16.msra.mxu0 %v225
    %335 = vmatprep.subr.bf16.mxu0 0
    %336 = vmatpush1.bf16.msra.mxu0 %v224
    %337 = vmatprep.subr.bf16.mxu0 0
    %338 = vmatpush1.bf16.msra.mxu0 %v223
    %339 = vmatprep.subr.bf16.mxu0 0
    %340 = vmatpush1.bf16.msra.mxu0 %v222
    %341 = vmatprep.subr.bf16.mxu0 0
    %342 = vmatpush1.bf16.msra.mxu0 %v221
    %343 = vmatprep.subr.bf16.mxu0 0
    %344 = vmatpush1.bf16.msra.mxu0 %v220
    %345 = vmatprep.subr.bf16.mxu0 0
    %346 = vmatpush1.bf16.msra.mxu0 %v219
    %347 = vmatprep.subr.bf16.mxu0 0
    %348 = vmatpush1.bf16.msra.mxu0 %v218
    %349 = vmatprep.subr.bf16.mxu0 0
    %350 = vmatpush2.bf16.msra.mxu0 0
    %351 = vmatprep.subr.bf16.mxu0 0
    %352 = vmatpush2.bf16.msra.mxu0 0
    %353 = vmatprep.subr.bf16.mxu0 0
    %354 = vmatpush2.bf16.msra.mxu0 0
    %355 = vmatprep.subr.bf16.mxu0 0
    %356 = vmatpush2.bf16.msra.mxu0 0
    %357 = vmatprep.subr.bf16.mxu0 0
    %358 = vmatpush2.bf16.msra.mxu0 0
    %359 = vmatprep.subr.bf16.mxu0 0
    %360 = vmatpush2.bf16.msra.mxu0 0
    %361 = vmatprep.subr.bf16.mxu0 0
    %362 = vmatpush2.bf16.msra.mxu0 0
    %363 = vmatprep.subr.bf16.mxu0 0
    %364 = vmatpush2.bf16.msra.mxu0 0
    %365 = vmatprep.mubr.bf16.mxu0 0
    %366 = vmatmul.mubr.bf16.gmra.mxu0 %v332
    %v367 = vpop.f32.mrf.mxu0
    %v368 = vadd.f32 0.0, %v367
    %v369 = vpop.f32.mrf.mxu0
    %v370 = vpop.f32.mrf.mxu0
    %v371 = vpop.f32.mrf.mxu0
    %372 = vdwg.mxu0
    %s373 = sld [smem:[#allocation2 + $0x1]]
    %v374 = vstv %s373
    %v375 = vmul.f32 %v374, %v282
    %s376 = sld [smem:[#allocation4 + $0x1]]
    %v377 = vstv %s376
    %v378 = vmul.f32 %v377, %v368
    %v379 = vsub.f32 %v375, %v378
    %s380 = scalar_lea.vmem %s5, 8
    %v381 = vld [vmem:[%s380] sm:$0xff]
    %v382 = vadd.f32 %v379, %v381
    %v383 = vpack.c.bf16 %v382, %v382
    %s384 = scalar_lea.vmem %s4, 16
    %v385 = vld [vmem:[%s384] sm:$0xff]
    %386 = vmatprep.subr.bf16.mxu0 0
    %387 = vmatpush1.bf16.msra.mxu0 %v130
    %388 = vmatprep.subr.bf16.mxu0 0
    %389 = vmatpush1.bf16.msra.mxu0 %v129
    %390 = vmatprep.subr.bf16.mxu0 0
    %391 = vmatpush1.bf16.msra.mxu0 %v128
    %392 = vmatprep.subr.bf16.mxu0 0
    %393 = vmatpush1.bf16.msra.mxu0 %v127
    %394 = vmatprep.subr.bf16.mxu0 0
    %395 = vmatpush1.bf16.msra.mxu0 %v126
    %396 = vmatprep.subr.bf16.mxu0 0
    %397 = vmatpush1.bf16.msra.mxu0 %v125
    %398 = vmatprep.subr.bf16.mxu0 0
    %399 = vmatpush1.bf16.msra.mxu0 %v124
    %400 = vmatprep.subr.bf16.mxu0 0
    %401 = vmatpush1.bf16.msra.mxu0 %v123
    %402 = vmatprep.subr.bf16.mxu0 0
    %403 = vmatpush2.bf16.msra.mxu0 0
    %404 = vmatprep.subr.bf16.mxu0 0
    %405 = vmatpush2.bf16.msra.mxu0 0
    %406 = vmatprep.subr.bf16.mxu0 0
    %407 = vmatpush2.bf16.msra.mxu0 0
    %408 = vmatprep.subr.bf16.mxu0 0
    %409 = vmatpush2.bf16.msra.mxu0 0
    %410 = vmatprep.subr.bf16.mxu0 0
    %411 = vmatpush2.bf16.msra.mxu0 0
    %412 = vmatprep.subr.bf16.mxu0 0
    %413 = vmatpush2.bf16.msra.mxu0 0
    %414 = vmatprep.subr.bf16.mxu0 0
    %415 = vmatpush2.bf16.msra.mxu0 0
    %416 = vmatprep.subr.bf16.mxu0 0
    %417 = vmatpush2.bf16.msra.mxu0 0
    %418 = vmatprep.mubr.bf16.mxu0 0
    %419 = vmatmul.mubr.bf16.gmra.mxu0 %v383
    %v420 = vpop.f32.mrf.mxu0
    %v421 = vadd.f32 %v385, %v420
    %v422 = vpop.f32.mrf.mxu0
    %v423 = vpop.f32.mrf.mxu0
    %v424 = vpop.f32.mrf.mxu0
    %425 = vdwg.mxu0
    %v426 = vadd.f32 %v421, %v55
    %v427 = vtanh.pop %v426
    %v428 = vmul.f32 %v427, 1.5
    %v429 = vtanh.pop %v421
    %v430 = vmul.f32 %v429, 0.5
    %v431 = vsub.f32 %v428, %v430
    %v432 = vpack.c.bf16 %v431, %v431
    %433 = vmatprep.subr.bf16.mxu0 0
    %434 = vmatpush1.bf16.msra.mxu0 %v225
    %435 = vmatprep.subr.bf16.mxu0 0
    %436 = vmatpush1.bf16.msra.mxu0 %v224
    %437 = vmatprep.subr.bf16.mxu0 0
    %438 = vmatpush1.bf16.msra.mxu0 %v223
    %439 = vmatprep.subr.bf16.mxu0 0
    %440 = vmatpush1.bf16.msra.mxu0 %v222
    %441 = vmatprep.subr.bf16.mxu0 0
    %442 = vmatpush1.bf16.msra.mxu0 %v221
    %443 = vmatprep.subr.bf16.mxu0 0
    %444 = vmatpush1.bf16.msra.mxu0 %v220
    %445 = vmatprep.subr.bf16.mxu0 0
    %446 = vmatpush1.bf16.msra.mxu0 %v219
    %447 = vmatprep.subr.bf16.mxu0 0
    %448 = vmatpush1.bf16.msra.mxu0 %v218
    %449 = vmatprep.subr.bf16.mxu0 0
    %450 = vmatpush2.bf16.msra.mxu0 0
    %451 = vmatprep.subr.bf16.mxu0 0
    %452 = vmatpush2.bf16.msra.mxu0 0
    %453 = vmatprep.subr.bf16.mxu0 0
    %454 = vmatpush2.bf16.msra.mxu0 0
    %455 = vmatprep.subr.bf16.mxu0 0
    %456 = vmatpush2.bf16.msra.mxu0 0
    %457 = vmatprep.subr.bf16.mxu0 0
    %458 = vmatpush2.bf16.msra.mxu0 0
    %459 = vmatprep.subr.bf16.mxu0 0
    %460 = vmatpush2.bf16.msra.mxu0 0
    %461 = vmatprep.subr.bf16.mxu0 0
    %462 = vmatpush2.bf16.msra.mxu0 0
    %463 = vmatprep.subr.bf16.mxu0 0
    %464 = vmatpush2.bf16.msra.mxu0 0
    %465 = vmatprep.mubr.bf16.mxu0 0
    %466 = vmatmul.mubr.bf16.gmra.mxu0 %v432
    %v467 = vpop.f32.mrf.mxu0
    %v468 = vadd.f32 0.0, %v467
    %v469 = vpop.f32.mrf.mxu0
    %v470 = vpop.f32.mrf.mxu0
    %v471 = vpop.f32.mrf.mxu0
    %472 = vdwg.mxu0
    %s473 = sld [smem:[#allocation2 + $0x2]]
    %v474 = vstv %s473
    %v475 = vmul.f32 %v474, %v382
    %s476 = sld [smem:[#allocation4 + $0x2]]
    %v477 = vstv %s476
    %v478 = vmul.f32 %v477, %v468
    %v479 = vsub.f32 %v475, %v478
    %s480 = scalar_lea.vmem %s5, 16
    %v481 = vld [vmem:[%s480] sm:$0xff]
    %v482 = vadd.f32 %v479, %v481
    %v483 = vpack.c.bf16 %v482, %v482
    %s484 = scalar_lea.vmem %s4, 24
    %v485 = vld [vmem:[%s484] sm:$0xff]
    %486 = vmatprep.subr.bf16.mxu0 0
    %487 = vmatpush1.bf16.msra.mxu0 %v130
    %488 = vmatprep.subr.bf16.mxu0 0
    %489 = vmatpush1.bf16.msra.mxu0 %v129
    %490 = vmatprep.subr.bf16.mxu0 0
    %491 = vmatpush1.bf16.msra.mxu0 %v128
    %492 = vmatprep.subr.bf16.mxu0 0
    %493 = vmatpush1.bf16.msra.mxu0 %v127
    %494 = vmatprep.subr.bf16.mxu0 0
    %495 = vmatpush1.bf16.msra.mxu0 %v126
    %496 = vmatprep.subr.bf16.mxu0 0
    %497 = vmatpush1.bf16.msra.mxu0 %v125
    %498 = vmatprep.subr.bf16.mxu0 0
    %499 = vmatpush1.bf16.msra.mxu0 %v124
    %500 = vmatprep.subr.bf16.mxu0 0
    %501 = vmatpush1.bf16.msra.mxu0 %v123
    %502 = vmatprep.subr.bf16.mxu0 0
    %503 = vmatpush2.bf16.msra.mxu0 0
    %504 = vmatprep.subr.bf16.mxu0 0
    %505 = vmatpush2.bf16.msra.mxu0 0
    %506 = vmatprep.subr.bf16.mxu0 0
    %507 = vmatpush2.bf16.msra.mxu0 0
    %508 = vmatprep.subr.bf16.mxu0 0
    %509 = vmatpush2.bf16.msra.mxu0 0
    %510 = vmatprep.subr.bf16.mxu0 0
    %511 = vmatpush2.bf16.msra.mxu0 0
    %512 = vmatprep.subr.bf16.mxu0 0
    %513 = vmatpush2.bf16.msra.mxu0 0
    %514 = vmatprep.subr.bf16.mxu0 0
    %515 = vmatpush2.bf16.msra.mxu0 0
    %516 = vmatprep.subr.bf16.mxu0 0
    %517 = vmatpush2.bf16.msra.mxu0 0
    %518 = vmatprep.mubr.bf16.mxu0 0
    %519 = vmatmul.mubr.bf16.gmra.mxu0 %v483
    %v520 = vpop.f32.mrf.mxu0
    %v521 = vadd.f32 %v485, %v520
    %v522 = vpop.f32.mrf.mxu0
    %v523 = vpop.f32.mrf.mxu0
    %v524 = vpop.f32.mrf.mxu0
    %525 = vdwg.mxu0
    %v526 = vadd.f32 %v521, %v55
    %v527 = vtanh.pop %v526
    %v528 = vmul.f32 %v527, 1.5
    %v529 = vtanh.pop %v521
    %v530 = vmul.f32 %v529, 0.5
    %v531 = vsub.f32 %v528, %v530
    %v532 = vpack.c.bf16 %v531, %v531
    %533 = vmatprep.subr.bf16.mxu0 0
    %534 = vmatpush1.bf16.msra.mxu0 %v225
    %535 = vmatprep.subr.bf16.mxu0 0
    %536 = vmatpush1.bf16.msra.mxu0 %v224
    %537 = vmatprep.subr.bf16.mxu0 0
    %538 = vmatpush1.bf16.msra.mxu0 %v223
    %539 = vmatprep.subr.bf16.mxu0 0
    %540 = vmatpush1.bf16.msra.mxu0 %v222
    %541 = vmatprep.subr.bf16.mxu0 0
    %542 = vmatpush1.bf16.msra.mxu0 %v221
    %543 = vmatprep.subr.bf16.mxu0 0
    %544 = vmatpush1.bf16.msra.mxu0 %v220
    %545 = vmatprep.subr.bf16.mxu0 0
    %546 = vmatpush1.bf16.msra.mxu0 %v219
    %547 = vmatprep.subr.bf16.mxu0 0
    %548 = vmatpush1.bf16.msra.mxu0 %v218
    %549 = vmatprep.subr.bf16.mxu0 0
    %550 = vmatpush2.bf16.msra.mxu0 0
    %551 = vmatprep.subr.bf16.mxu0 0
    %552 = vmatpush2.bf16.msra.mxu0 0
    %553 = vmatprep.subr.bf16.mxu0 0
    %554 = vmatpush2.bf16.msra.mxu0 0
    %555 = vmatprep.subr.bf16.mxu0 0
    %556 = vmatpush2.bf16.msra.mxu0 0
    %557 = vmatprep.subr.bf16.mxu0 0
    %558 = vmatpush2.bf16.msra.mxu0 0
    %559 = vmatprep.subr.bf16.mxu0 0
    %560 = vmatpush2.bf16.msra.mxu0 0
    %561 = vmatprep.subr.bf16.mxu0 0
    %562 = vmatpush2.bf16.msra.mxu0 0
    %563 = vmatprep.subr.bf16.mxu0 0
    %564 = vmatpush2.bf16.msra.mxu0 0
    %565 = vmatprep.mubr.bf16.mxu0 0
    %566 = vmatmul.mubr.bf16.gmra.mxu0 %v532
    %v567 = vpop.f32.mrf.mxu0
    %v568 = vadd.f32 0.0, %v567
    %v569 = vpop.f32.mrf.mxu0
    %v570 = vpop.f32.mrf.mxu0
    %v571 = vpop.f32.mrf.mxu0
    %572 = vdwg.mxu0
    %s573 = sld [smem:[#allocation2 + $0x3]]
    %v574 = vstv %s573
    %v575 = vmul.f32 %v574, %v482
    %s576 = sld [smem:[#allocation4 + $0x3]]
    %v577 = vstv %s576
    %v578 = vmul.f32 %v577, %v568
    %v579 = vsub.f32 %v575, %v578
    %s580 = scalar_lea.vmem %s5, 24
    %v581 = vld [vmem:[%s580] sm:$0xff]
    %v582 = vadd.f32 %v579, %v581
    %v583 = vpack.c.bf16 %v582, %v582
    %s584 = scalar_lea.vmem %s4, 32
    %v585 = vld [vmem:[%s584] sm:$0xff]
    %586 = vmatprep.subr.bf16.mxu0 0
    %587 = vmatpush1.bf16.msra.mxu0 %v130
    %588 = vmatprep.subr.bf16.mxu0 0
    %589 = vmatpush1.bf16.msra.mxu0 %v129
    %590 = vmatprep.subr.bf16.mxu0 0
    %591 = vmatpush1.bf16.msra.mxu0 %v128
    %592 = vmatprep.subr.bf16.mxu0 0
    %593 = vmatpush1.bf16.msra.mxu0 %v127
    %594 = vmatprep.subr.bf16.mxu0 0
    %595 = vmatpush1.bf16.msra.mxu0 %v126
    %596 = vmatprep.subr.bf16.mxu0 0
    %597 = vmatpush1.bf16.msra.mxu0 %v125
    %598 = vmatprep.subr.bf16.mxu0 0
    %599 = vmatpush1.bf16.msra.mxu0 %v124
    %600 = vmatprep.subr.bf16.mxu0 0
    %601 = vmatpush1.bf16.msra.mxu0 %v123
    %602 = vmatprep.subr.bf16.mxu0 0
    %603 = vmatpush2.bf16.msra.mxu0 0
    %604 = vmatprep.subr.bf16.mxu0 0
    %605 = vmatpush2.bf16.msra.mxu0 0
    %606 = vmatprep.subr.bf16.mxu0 0
    %607 = vmatpush2.bf16.msra.mxu0 0
    %608 = vmatprep.subr.bf16.mxu0 0
    %609 = vmatpush2.bf16.msra.mxu0 0
    %610 = vmatprep.subr.bf16.mxu0 0
    %611 = vmatpush2.bf16.msra.mxu0 0
    %612 = vmatprep.subr.bf16.mxu0 0
    %613 = vmatpush2.bf16.msra.mxu0 0
    %614 = vmatprep.subr.bf16.mxu0 0
    %615 = vmatpush2.bf16.msra.mxu0 0
    %616 = vmatprep.subr.bf16.mxu0 0
    %617 = vmatpush2.bf16.msra.mxu0 0
    %618 = vmatprep.mubr.bf16.mxu0 0
    %619 = vmatmul.mubr.bf16.gmra.mxu0 %v583
    %v620 = vpop.f32.mrf.mxu0
    %v621 = vadd.f32 %v585, %v620
    %v622 = vpop.f32.mrf.mxu0
    %v623 = vpop.f32.mrf.mxu0
    %v624 = vpop.f32.mrf.mxu0
    %625 = vdwg.mxu0
    %v626 = vadd.f32 %v621, %v55
    %v627 = vtanh.pop %v626
    %v628 = vmul.f32 %v627, 1.5
    %v629 = vtanh.pop %v621
    %v630 = vmul.f32 %v629, 0.5
    %v631 = vsub.f32 %v628, %v630
    %v632 = vpack.c.bf16 %v631, %v631
    %633 = vmatprep.subr.bf16.mxu0 0
    %634 = vmatpush1.bf16.msra.mxu0 %v225
    %635 = vmatprep.subr.bf16.mxu0 0
    %636 = vmatpush1.bf16.msra.mxu0 %v224
    %637 = vmatprep.subr.bf16.mxu0 0
    %638 = vmatpush1.bf16.msra.mxu0 %v223
    %639 = vmatprep.subr.bf16.mxu0 0
    %640 = vmatpush1.bf16.msra.mxu0 %v222
    %641 = vmatprep.subr.bf16.mxu0 0
    %642 = vmatpush1.bf16.msra.mxu0 %v221
    %643 = vmatprep.subr.bf16.mxu0 0
    %644 = vmatpush1.bf16.msra.mxu0 %v220
    %645 = vmatprep.subr.bf16.mxu0 0
    %646 = vmatpush1.bf16.msra.mxu0 %v219
    %647 = vmatprep.subr.bf16.mxu0 0
    %648 = vmatpush1.bf16.msra.mxu0 %v218
    %649 = vmatprep.subr.bf16.mxu0 0
    %650 = vmatpush2.bf16.msra.mxu0 0
    %651 = vmatprep.subr.bf16.mxu0 0
    %652 = vmatpush2.bf16.msra.mxu0 0
    %653 = vmatprep.subr.bf16.mxu0 0
    %654 = vmatpush2.bf16.msra.mxu0 0
    %655 = vmatprep.subr.bf16.mxu0 0
    %656 = vmatpush2.bf16.msra.mxu0 0
    %657 = vmatprep.subr.bf16.mxu0 0
    %658 = vmatpush2.bf16.msra.mxu0 0
    %659 = vmatprep.subr.bf16.mxu0 0
    %660 = vmatpush2.bf16.msra.mxu0 0
    %661 = vmatprep.subr.bf16.mxu0 0
    %662 = vmatpush2.bf16.msra.mxu0 0
    %663 = vmatprep.subr.bf16.mxu0 0
    %664 = vmatpush2.bf16.msra.mxu0 0
    %665 = vmatprep.mubr.bf16.mxu0 0
    %666 = vmatmul.mubr.bf16.gmra.mxu0 %v632
    %v667 = vpop.f32.mrf.mxu0
    %v668 = vadd.f32 0.0, %v667
    %v669 = vpop.f32.mrf.mxu0
    %v670 = vpop.f32.mrf.mxu0
    %v671 = vpop.f32.mrf.mxu0
    %672 = vdwg.mxu0
    %s673 = sld [smem:[#allocation2 + $0x4]]
    %v674 = vstv %s673
    %v675 = vmul.f32 %v674, %v582
    %s676 = sld [smem:[#allocation4 + $0x4]]
    %v677 = vstv %s676
    %v678 = vmul.f32 %v677, %v668
    %v679 = vsub.f32 %v675, %v678
    %s680 = scalar_lea.vmem %s5, 32
    %v681 = vld [vmem:[%s680] sm:$0xff]
    %v682 = vadd.f32 %v679, %v681
    %v683 = vpack.c.bf16 %v682, %v682
    %s684 = scalar_lea.vmem %s4, 40
    %v685 = vld [vmem:[%s684] sm:$0xff]
    %686 = vmatprep.subr.bf16.mxu0 0
    %687 = vmatpush1.bf16.msra.mxu0 %v130
    %688 = vmatprep.subr.bf16.mxu0 0
    %689 = vmatpush1.bf16.msra.mxu0 %v129
    %690 = vmatprep.subr.bf16.mxu0 0
    %691 = vmatpush1.bf16.msra.mxu0 %v128
    %692 = vmatprep.subr.bf16.mxu0 0
    %693 = vmatpush1.bf16.msra.mxu0 %v127
    %694 = vmatprep.subr.bf16.mxu0 0
    %695 = vmatpush1.bf16.msra.mxu0 %v126
    %696 = vmatprep.subr.bf16.mxu0 0
    %697 = vmatpush1.bf16.msra.mxu0 %v125
    %698 = vmatprep.subr.bf16.mxu0 0
    %699 = vmatpush1.bf16.msra.mxu0 %v124
    %700 = vmatprep.subr.bf16.mxu0 0
    %701 = vmatpush1.bf16.msra.mxu0 %v123
    %702 = vmatprep.subr.bf16.mxu0 0
    %703 = vmatpush2.bf16.msra.mxu0 0
    %704 = vmatprep.subr.bf16.mxu0 0
    %705 = vmatpush2.bf16.msra.mxu0 0
    %706 = vmatprep.subr.bf16.mxu0 0
    %707 = vmatpush2.bf16.msra.mxu0 0
    %708 = vmatprep.subr.bf16.mxu0 0
    %709 = vmatpush2.bf16.msra.mxu0 0
    %710 = vmatprep.subr.bf16.mxu0 0
    %711 = vmatpush2.bf16.msra.mxu0 0
    %712 = vmatprep.subr.bf16.mxu0 0
    %713 = vmatpush2.bf16.msra.mxu0 0
    %714 = vmatprep.subr.bf16.mxu0 0
    %715 = vmatpush2.bf16.msra.mxu0 0
    %716 = vmatprep.subr.bf16.mxu0 0
    %717 = vmatpush2.bf16.msra.mxu0 0
    %718 = vmatprep.mubr.bf16.mxu0 0
    %719 = vmatmul.mubr.bf16.gmra.mxu0 %v683
    %v720 = vpop.f32.mrf.mxu0
    %v721 = vadd.f32 %v685, %v720
    %v722 = vpop.f32.mrf.mxu0
    %v723 = vpop.f32.mrf.mxu0
    %v724 = vpop.f32.mrf.mxu0
    %725 = vdwg.mxu0
    %v726 = vadd.f32 %v721, %v55
    %v727 = vtanh.pop %v726
    %v728 = vmul.f32 %v727, 1.5
    %v729 = vtanh.pop %v721
    %v730 = vmul.f32 %v729, 0.5
    %v731 = vsub.f32 %v728, %v730
    %v732 = vpack.c.bf16 %v731, %v731
    %733 = vmatprep.subr.bf16.mxu0 0
    %734 = vmatpush1.bf16.msra.mxu0 %v225
    %735 = vmatprep.subr.bf16.mxu0 0
    %736 = vmatpush1.bf16.msra.mxu0 %v224
    %737 = vmatprep.subr.bf16.mxu0 0
    %738 = vmatpush1.bf16.msra.mxu0 %v223
    %739 = vmatprep.subr.bf16.mxu0 0
    %740 = vmatpush1.bf16.msra.mxu0 %v222
    %741 = vmatprep.subr.bf16.mxu0 0
    %742 = vmatpush1.bf16.msra.mxu0 %v221
    %743 = vmatprep.subr.bf16.mxu0 0
    %744 = vmatpush1.bf16.msra.mxu0 %v220
    %745 = vmatprep.subr.bf16.mxu0 0
    %746 = vmatpush1.bf16.msra.mxu0 %v219
    %747 = vmatprep.subr.bf16.mxu0 0
    %748 = vmatpush1.bf16.msra.mxu0 %v218
    %749 = vmatprep.subr.bf16.mxu0 0
    %750 = vmatpush2.bf16.msra.mxu0 0
    %751 = vmatprep.subr.bf16.mxu0 0
    %752 = vmatpush2.bf16.msra.mxu0 0
    %753 = vmatprep.subr.bf16.mxu0 0
    %754 = vmatpush2.bf16.msra.mxu0 0
    %755 = vmatprep.subr.bf16.mxu0 0
    %756 = vmatpush2.bf16.msra.mxu0 0
    %757 = vmatprep.subr.bf16.mxu0 0
    %758 = vmatpush2.bf16.msra.mxu0 0
    %759 = vmatprep.subr.bf16.mxu0 0
    %760 = vmatpush2.bf16.msra.mxu0 0
    %761 = vmatprep.subr.bf16.mxu0 0
    %762 = vmatpush2.bf16.msra.mxu0 0
    %763 = vmatprep.subr.bf16.mxu0 0
    %764 = vmatpush2.bf16.msra.mxu0 0
    %765 = vmatprep.mubr.bf16.mxu0 0
    %766 = vmatmul.mubr.bf16.gmra.mxu0 %v732
    %v767 = vpop.f32.mrf.mxu0
    %v768 = vadd.f32 0.0, %v767
    %v769 = vpop.f32.mrf.mxu0
    %v770 = vpop.f32.mrf.mxu0
    %v771 = vpop.f32.mrf.mxu0
    %772 = vdwg.mxu0
    %s773 = sld [smem:[#allocation2 + $0x5]]
    %v774 = vstv %s773
    %v775 = vmul.f32 %v774, %v682
    %s776 = sld [smem:[#allocation4 + $0x5]]
    %v777 = vstv %s776
    %v778 = vmul.f32 %v777, %v768
    %v779 = vsub.f32 %v775, %v778
    %s780 = scalar_lea.vmem %s5, 40
    %v781 = vld [vmem:[%s780] sm:$0xff]
    %v782 = vadd.f32 %v779, %v781
    %v783 = vpack.c.bf16 %v782, %v782
    %s784 = scalar_lea.vmem %s4, 48
    %v785 = vld [vmem:[%s784] sm:$0xff]
    %786 = vmatprep.subr.bf16.mxu0 0
    %787 = vmatpush1.bf16.msra.mxu0 %v130
    %788 = vmatprep.subr.bf16.mxu0 0
    %789 = vmatpush1.bf16.msra.mxu0 %v129
    %790 = vmatprep.subr.bf16.mxu0 0
    %791 = vmatpush1.bf16.msra.mxu0 %v128
    %792 = vmatprep.subr.bf16.mxu0 0
    %793 = vmatpush1.bf16.msra.mxu0 %v127
    %794 = vmatprep.subr.bf16.mxu0 0
    %795 = vmatpush1.bf16.msra.mxu0 %v126
    %796 = vmatprep.subr.bf16.mxu0 0
    %797 = vmatpush1.bf16.msra.mxu0 %v125
    %798 = vmatprep.subr.bf16.mxu0 0
    %799 = vmatpush1.bf16.msra.mxu0 %v124
    %800 = vmatprep.subr.bf16.mxu0 0
    %801 = vmatpush1.bf16.msra.mxu0 %v123
    %802 = vmatprep.subr.bf16.mxu0 0
    %803 = vmatpush2.bf16.msra.mxu0 0
    %804 = vmatprep.subr.bf16.mxu0 0
    %805 = vmatpush2.bf16.msra.mxu0 0
    %806 = vmatprep.subr.bf16.mxu0 0
    %807 = vmatpush2.bf16.msra.mxu0 0
    %808 = vmatprep.subr.bf16.mxu0 0
    %809 = vmatpush2.bf16.msra.mxu0 0
    %810 = vmatprep.subr.bf16.mxu0 0
    %811 = vmatpush2.bf16.msra.mxu0 0
    %812 = vmatprep.subr.bf16.mxu0 0
    %813 = vmatpush2.bf16.msra.mxu0 0
    %814 = vmatprep.subr.bf16.mxu0 0
    %815 = vmatpush2.bf16.msra.mxu0 0
    %816 = vmatprep.subr.bf16.mxu0 0
    %817 = vmatpush2.bf16.msra.mxu0 0
    %818 = vmatprep.mubr.bf16.mxu0 0
    %819 = vmatmul.mubr.bf16.gmra.mxu0 %v783
    %v820 = vpop.f32.mrf.mxu0
    %v821 = vadd.f32 %v785, %v820
    %v822 = vpop.f32.mrf.mxu0
    %v823 = vpop.f32.mrf.mxu0
    %v824 = vpop.f32.mrf.mxu0
    %825 = vdwg.mxu0
    %v826 = vadd.f32 %v821, %v55
    %v827 = vtanh.pop %v826
    %v828 = vmul.f32 %v827, 1.5
    %v829 = vtanh.pop %v821
    %v830 = vmul.f32 %v829, 0.5
    %v831 = vsub.f32 %v828, %v830
    %v832 = vpack.c.bf16 %v831, %v831
    %833 = vmatprep.subr.bf16.mxu0 0
    %834 = vmatpush1.bf16.msra.mxu0 %v225
    %835 = vmatprep.subr.bf16.mxu0 0
    %836 = vmatpush1.bf16.msra.mxu0 %v224
    %837 = vmatprep.subr.bf16.mxu0 0
    %838 = vmatpush1.bf16.msra.mxu0 %v223
    %839 = vmatprep.subr.bf16.mxu0 0
    %840 = vmatpush1.bf16.msra.mxu0 %v222
    %841 = vmatprep.subr.bf16.mxu0 0
    %842 = vmatpush1.bf16.msra.mxu0 %v221
    %843 = vmatprep.subr.bf16.mxu0 0
    %844 = vmatpush1.bf16.msra.mxu0 %v220
    %845 = vmatprep.subr.bf16.mxu0 0
    %846 = vmatpush1.bf16.msra.mxu0 %v219
    %847 = vmatprep.subr.bf16.mxu0 0
    %848 = vmatpush1.bf16.msra.mxu0 %v218
    %849 = vmatprep.subr.bf16.mxu0 0
    %850 = vmatpush2.bf16.msra.mxu0 0
    %851 = vmatprep.subr.bf16.mxu0 0
    %852 = vmatpush2.bf16.msra.mxu0 0
    %853 = vmatprep.subr.bf16.mxu0 0
    %854 = vmatpush2.bf16.msra.mxu0 0
    %855 = vmatprep.subr.bf16.mxu0 0
    %856 = vmatpush2.bf16.msra.mxu0 0
    %857 = vmatprep.subr.bf16.mxu0 0
    %858 = vmatpush2.bf16.msra.mxu0 0
    %859 = vmatprep.subr.bf16.mxu0 0
    %860 = vmatpush2.bf16.msra.mxu0 0
    %861 = vmatprep.subr.bf16.mxu0 0
    %862 = vmatpush2.bf16.msra.mxu0 0
    %863 = vmatprep.subr.bf16.mxu0 0
    %864 = vmatpush2.bf16.msra.mxu0 0
    %865 = vmatprep.mubr.bf16.mxu0 0
    %866 = vmatmul.mubr.bf16.gmra.mxu0 %v832
    %v867 = vpop.f32.mrf.mxu0
    %v868 = vadd.f32 0.0, %v867
    %v869 = vpop.f32.mrf.mxu0
    %v870 = vpop.f32.mrf.mxu0
    %v871 = vpop.f32.mrf.mxu0
    %872 = vdwg.mxu0
    %s873 = sld [smem:[#allocation2 + $0x6]]
    %v874 = vstv %s873
    %v875 = vmul.f32 %v874, %v782
    %s876 = sld [smem:[#allocation4 + $0x6]]
    %v877 = vstv %s876
    %v878 = vmul.f32 %v877, %v868
    %v879 = vsub.f32 %v875, %v878
    %s880 = scalar_lea.vmem %s5, 48
    %v881 = vld [vmem:[%s880] sm:$0xff]
    %v882 = vadd.f32 %v879, %v881
    %v883 = vpack.c.bf16 %v882, %v882
    %s884 = scalar_lea.vmem %s4, 56
    %v885 = vld [vmem:[%s884] sm:$0xff]
    %886 = vmatprep.subr.bf16.mxu0 0
    %887 = vmatpush1.bf16.msra.mxu0 %v130
    %888 = vmatprep.subr.bf16.mxu0 0
    %889 = vmatpush1.bf16.msra.mxu0 %v129
    %890 = vmatprep.subr.bf16.mxu0 0
    %891 = vmatpush1.bf16.msra.mxu0 %v128
    %892 = vmatprep.subr.bf16.mxu0 0
    %893 = vmatpush1.bf16.msra.mxu0 %v127
    %894 = vmatprep.subr.bf16.mxu0 0
    %895 = vmatpush1.bf16.msra.mxu0 %v126
    %896 = vmatprep.subr.bf16.mxu0 0
    %897 = vmatpush1.bf16.msra.mxu0 %v125
    %898 = vmatprep.subr.bf16.mxu0 0
    %899 = vmatpush1.bf16.msra.mxu0 %v124
    %900 = vmatprep.subr.bf16.mxu0 0
    %901 = vmatpush1.bf16.msra.mxu0 %v123
    %902 = vmatprep.subr.bf16.mxu0 0
    %903 = vmatpush2.bf16.msra.mxu0 0
    %904 = vmatprep.subr.bf16.mxu0 0
    %905 = vmatpush2.bf16.msra.mxu0 0
    %906 = vmatprep.subr.bf16.mxu0 0
    %907 = vmatpush2.bf16.msra.mxu0 0
    %908 = vmatprep.subr.bf16.mxu0 0
    %909 = vmatpush2.bf16.msra.mxu0 0
    %910 = vmatprep.subr.bf16.mxu0 0
    %911 = vmatpush2.bf16.msra.mxu0 0
    %912 = vmatprep.subr.bf16.mxu0 0
    %913 = vmatpush2.bf16.msra.mxu0 0
    %914 = vmatprep.subr.bf16.mxu0 0
    %915 = vmatpush2.bf16.msra.mxu0 0
    %916 = vmatprep.subr.bf16.mxu0 0
    %917 = vmatpush2.bf16.msra.mxu0 0
    %918 = vmatprep.mubr.bf16.mxu0 0
    %919 = vmatmul.mubr.bf16.gmra.mxu0 %v883
    %v920 = vpop.f32.mrf.mxu0
    %v921 = vadd.f32 %v885, %v920
    %v922 = vpop.f32.mrf.mxu0
    %v923 = vpop.f32.mrf.mxu0
    %v924 = vpop.f32.mrf.mxu0
    %925 = vdwg.mxu0
    %v926 = vadd.f32 %v921, %v55
    %v927 = vtanh.pop %v926
    %v928 = vmul.f32 %v927, 1.5
    %v929 = vtanh.pop %v921
    %v930 = vmul.f32 %v929, 0.5
    %v931 = vsub.f32 %v928, %v930
    %v932 = vpack.c.bf16 %v931, %v931
    %933 = vmatprep.subr.bf16.mxu0 0
    %934 = vmatpush1.bf16.msra.mxu0 %v225
    %935 = vmatprep.subr.bf16.mxu0 0
    %936 = vmatpush1.bf16.msra.mxu0 %v224
    %937 = vmatprep.subr.bf16.mxu0 0
    %938 = vmatpush1.bf16.msra.mxu0 %v223
    %939 = vmatprep.subr.bf16.mxu0 0
    %940 = vmatpush1.bf16.msra.mxu0 %v222
    %941 = vmatprep.subr.bf16.mxu0 0
    %942 = vmatpush1.bf16.msra.mxu0 %v221
    %943 = vmatprep.subr.bf16.mxu0 0
    %944 = vmatpush1.bf16.msra.mxu0 %v220
    %945 = vmatprep.subr.bf16.mxu0 0
    %946 = vmatpush1.bf16.msra.mxu0 %v219
    %947 = vmatprep.subr.bf16.mxu0 0
    %948 = vmatpush1.bf16.msra.mxu0 %v218
    %949 = vmatprep.subr.bf16.mxu0 0
    %950 = vmatpush2.bf16.msra.mxu0 0
    %951 = vmatprep.subr.bf16.mxu0 0
    %952 = vmatpush2.bf16.msra.mxu0 0
    %953 = vmatprep.subr.bf16.mxu0 0
    %954 = vmatpush2.bf16.msra.mxu0 0
    %955 = vmatprep.subr.bf16.mxu0 0
    %956 = vmatpush2.bf16.msra.mxu0 0
    %957 = vmatprep.subr.bf16.mxu0 0
    %958 = vmatpush2.bf16.msra.mxu0 0
    %959 = vmatprep.subr.bf16.mxu0 0
    %960 = vmatpush2.bf16.msra.mxu0 0
    %961 = vmatprep.subr.bf16.mxu0 0
    %962 = vmatpush2.bf16.msra.mxu0 0
    %963 = vmatprep.subr.bf16.mxu0 0
    %964 = vmatpush2.bf16.msra.mxu0 0
    %965 = vmatprep.mubr.bf16.mxu0 0
    %966 = vmatmul.mubr.bf16.gmra.mxu0 %v932
    %v967 = vpop.f32.mrf.mxu0
    %v968 = vadd.f32 0.0, %v967
    %v969 = vpop.f32.mrf.mxu0
    %v970 = vpop.f32.mrf.mxu0
    %v971 = vpop.f32.mrf.mxu0
    %972 = vdwg.mxu0
    %s973 = sld [smem:[#allocation2 + $0x7]]
    %v974 = vstv %s973
    %v975 = vmul.f32 %v974, %v882
    %s976 = sld [smem:[#allocation4 + $0x7]]
    %v977 = vstv %s976
    %v978 = vmul.f32 %v977, %v968
    %v979 = vsub.f32 %v975, %v978
    %s980 = scalar_lea.vmem %s5, 56
    %v981 = vld [vmem:[%s980] sm:$0xff]
    %v982 = vadd.f32 %v979, %v981
    %983 = vst [vmem:[%s8] sm:$0xff] %v982
    // Predicated region
    $region42: #{gaussian_diffusion_sample.1} parent=1 // pred_check
      _
    $region43: #{gaussian_diffusion_sample.1} parent=1 // pred_check_branch
      %985 = sbr.rel (0) target = $region45
    $region44: #{gaussian_diffusion_sample.1} parent=1 // pred_region
      _
    $region45: #{gaussian_diffusion_sample.1} parent=1 // pred_fallthru
      _
    // Predicated region
    $region46: #{gaussian_diffusion_sample.1} parent=1 // pred_check
      _
    $region47: #{gaussian_diffusion_sample.1} parent=1 // pred_check_branch
      %987 = sbr.rel (0) target = $region49
    $region48: #{gaussian_diffusion_sample.1} parent=1 // pred_region
      _
    $region49: #{gaussian_diffusion_sample.1} parent=1 // pred_fallthru
      _
    %988 = vsyncpa [#allocation3], 1
    %989 = vsyncpa [#allocation5], 1

</llo_original>
